<compile_context>
chip_gen: v6e
topology: v6e:2x2x1
jax: 0.10.0
libtpu: 0.0.40
codegen_flags: <defaults>
</compile_context>

<pallas_src>
import numpy as np
import jax
import jax.numpy as jnp
from jax.experimental import pallas as pl
from jax.experimental.pallas import tpu as pltpu

EPS = 1e-4                      # WeightedMerge eps
CDTYPE = jnp.bfloat16           # dtype of MXU constant operands (f32 accumulate)


# ----------------------- constant selection-matrix helpers ------------------

def _select_rows(n_dst, n_src, src_of_dst):
    """(n_dst, n_src) 0/1 matrix; left-multiply selects row src_of_dst(j) per out row."""
    m = np.zeros((n_dst, n_src), np.float32)
    for j in range(n_dst):
        m[j, src_of_dst(j)] = 1.0
    return m


def _select_cols(n_src, n_dst, src_of_dst):
    """(n_src, n_dst) 0/1 matrix; right-multiply selects col src_of_dst(j) per out col."""
    return _select_rows(n_dst, n_src, src_of_dst).T


def _shift_rows(n, d):
    """(n, n) matrix S with S[i, i+d] = 1 when valid; S @ x = x shifted, zero-filled."""
    m = np.zeros((n, n), np.float32)
    for i in range(n):
        if 0 <= i + d < n:
            m[i, i + d] = 1.0
    return m


# ----------------------------- fused merge kernel ---------------------------

def _make_merge_kernel(plan):
    """plan: tuple of (kind, has_proj) with kind in {'same', 'up', 'down'}.

    Ref order:
      refs[0]              : (n,) normalized merge weights     (SMEM)
      per input            : x (1, Hi, Wi*Ci) f32 block
                             'same'+proj: CM (Wi*Ci, W*C), BV (1, W*C)
                             'up'       : CM (Wi*Ci, W*C), RM (H, Hi)[, BV]
                             'down'     : CMs (k+1, Wi*C, W*C), RMs (k+1, H, Hi)
      tail                 : SROW (3, H, H), A (3, W*C, W*C), PW (W*C, W*C),
                             PWB (1, W*C)
      last                 : output (1, H, W*C) f32 block
    """
    def kernel(*refs):
        f32 = jnp.float32
        w_ref = refs[0]
        pos = 1
        acc = None

        for i, (kind, has_proj) in enumerate(plan):
            x = refs[pos][0]                       # (Hi, Wi*Ci) f32
            pos += 1
            xb = x.astype(CDTYPE)

            if kind == 'same':
                if has_proj:                       # Resample 1x1 conv (block-diag matmul)
                    cm = refs[pos][...]
                    bv = refs[pos + 1][...]
                    pos += 2
                    y = jnp.dot(xb, cm, preferred_element_type=f32) + bv
                else:
                    y = x
            elif kind == 'up':                     # nearest upsample == selection matmuls
                cm = refs[pos][...]
                rm = refs[pos + 1][...]
                pos += 2
                t = jnp.dot(xb, cm, preferred_element_type=f32)
                y = jnp.dot(rm, t.astype(CDTYPE), preferred_element_type=f32)
                if has_proj:
                    y = y + refs[pos][...]
                    pos += 1
            else:                                  # 'down': max_pool2d(k+1, stride k, pad 1)
                cms = refs[pos]
                rms = refs[pos + 1]
                pos += 2
                ntap = cms.shape[0]
                u = jnp.dot(xb, cms[0], preferred_element_type=f32)
                for d in range(1, ntap):
                    u = jnp.maximum(u, jnp.dot(xb, cms[d], preferred_element_type=f32))
                ub = u.astype(CDTYPE)
                y = jnp.dot(rms[0], ub, preferred_element_type=f32)
                for d in range(1, ntap):
                    y = jnp.maximum(y, jnp.dot(rms[d], ub, preferred_element_type=f32))

            contrib = w_ref[i] * y                 # weighted merge (VPU, f32)
            acc = contrib if acc is None else acc + contrib

        z = acc * jax.nn.sigmoid(acc)              # MemoryEfficientSwish (EUP)
        zb = z.astype(CDTYPE)

        srow = refs[pos]                           # (3, H, H)
        amat = refs[pos + 1]                       # (3, W*C, W*C)
        pw = refs[pos + 2][...]                    # (W*C, W*C)
        pwb = refs[pos + 3][...]                   # (1, W*C)
        o_ref = refs[pos + 4]

        # depthwise 3x3 (zero pad 1): sum_dh SROW[dh] @ (z @ A[dh])
        dw = None
        for dh in range(3):
            t = jnp.dot(zb, amat[dh], preferred_element_type=f32)
            t = jnp.dot(srow[dh], t.astype(CDTYPE), preferred_element_type=f32)
            dw = t if dw is None else dw + t

        # pointwise 1x1 (bias) as block-diagonal matmul
        out = jnp.dot(dw.astype(CDTYPE), pw, preferred_element_type=f32) + pwb
        o_ref[0] = out

    return kernel


# ----------------------------- fused merge wrapper --------------------------

def fused_weighted_merge(xs, p, target_size, out_channels):
    """One WeightedMerge (resample + weighted sum + swish + separable conv)
    as a single Pallas kernel. xs: list of NHWC f32 arrays -> NHWC output."""
    N = xs[0].shape[0]
    H = W = int(target_size)
    C = int(out_channels)
    WC = W * C

    # normalized merge weights (scalar math stays in plain JAX)
    w = jax.nn.relu(p['w_merge'].astype(jnp.float32))
    w = (w / (jnp.sum(w) + EPS)).astype(jnp.float32)

    plan = []
    args = [w]
    in_specs = [pl.BlockSpec(memory_space=pltpu.MemorySpace.SMEM)]

    def add_full(a):
        args.append(a)
        in_specs.append(pl.BlockSpec(memory_space=pltpu.MemorySpace.VMEM))

    for x, proj in zip(xs, p['resample']):
        _, Hi, Wi, Ci = x.shape
        args.append(x.reshape(N, Hi, Wi * Ci))     # contiguous reshape: free
        in_specs.append(pl.BlockSpec((1, Hi, Wi * Ci), lambda b: (b, 0, 0)))
        has_proj = proj is not None

        if Hi == H:
            plan.append(('same', has_proj))
            if has_proj:
                cm = jnp.kron(jnp.eye(Wi, dtype=jnp.float32), proj['w'])
                add_full(cm.astype(CDTYPE))
                add_full(jnp.tile(proj['b'], W).reshape(1, WC).astype(jnp.float32))
        elif Hi < H:
            plan.append(('up', has_proj))
            # nearest: src index = (dst * src_size) // dst_size
            s_col = _select_cols(Wi, W, lambda j: (j * Wi) // W)          # (Wi, W)
            rm = _select_rows(H, Hi, lambda j: (j * Hi) // H)             # (H, Hi)
            if has_proj:
                cm = jnp.kron(jnp.asarray(s_col), proj['w'])              # conv folded w/ upsample
            else:
                cm = jnp.kron(jnp.asarray(s_col), jnp.eye(C, dtype=jnp.float32))
            add_full(cm.astype(CDTYPE))
            add_full(jnp.asarray(rm).astype(CDTYPE))
            if has_proj:
                add_full(jnp.tile(proj['b'], W).reshape(1, WC).astype(jnp.float32))
        else:
            plan.append(('down', has_proj))
            assert not has_proj
            k = Wi // W
            # F.max_pool2d(kernel=k+1, stride=k, padding=1); requires exact ratio.
            assert Hi == k * H and Wi == k * W, \
                "max-pool resize requires an exact integer ratio"
            # OOB taps are clamped to the edge, equivalent to -inf padding under max.
            cms = np.stack([
                np.kron(_select_cols(Wi, W,
                                     lambda j, d=d: min(max(j * k - 1 + d, 0), Wi - 1)),
                        np.eye(C, dtype=np.float32))
                for d in range(k + 1)], axis=0)                           # (k+1, Wi*C, W*C)
            rms = np.stack([
                _select_rows(H, Hi,
                             lambda j, d=d: min(max(j * k - 1 + d, 0), Hi - 1))
                for d in range(k + 1)], axis=0)                           # (k+1, H, Hi)
            add_full(jnp.asarray(cms).astype(CDTYPE))
            add_full(jnp.asarray(rms).astype(CDTYPE))

    # SeparableConv2d: depthwise 3x3 (no bias) as row/column shift matmuls, then
    # pointwise 1x1 (bias) as a block-diagonal matmul.
    # TODO(synk): SeparableConv2d source not provided; assumed depthwise(bias=False)
    # -> pointwise(bias=True), norm_cfg=None, no activation in between.
    srow = np.stack([_shift_rows(H, dh - 1) for dh in range(3)], axis=0)  # (3, H, H)
    amat = jnp.stack([
        sum(jnp.kron(jnp.asarray(_shift_rows(W, dw - 1).T),
                     jnp.diag(p['dw_w'][dh, dw]))
            for dw in range(3))
        for dh in range(3)], axis=0)                                      # (3, WC, WC)
    pw_bd = jnp.kron(jnp.eye(W, dtype=jnp.float32), p['pw_w'])            # (WC, WC)
    pwb = jnp.tile(p['pw_b'], W).reshape(1, WC).astype(jnp.float32)

    add_full(jnp.asarray(srow).astype(CDTYPE))
    add_full(amat.astype(CDTYPE))
    add_full(pw_bd.astype(CDTYPE))
    add_full(pwb)

    out = pl.pallas_call(
        _make_merge_kernel(tuple(plan)),
        grid=(N,),
        out_shape=jax.ShapeDtypeStruct((N, H, WC), jnp.float32),
        in_specs=in_specs,
        out_specs=pl.BlockSpec((1, H, WC), lambda b: (b, 0, 0)),
        compiler_params=pltpu.CompilerParams(
            dimension_semantics=("parallel",),           # batch across TCs on v7x
            vmem_limit_bytes=32 * 1024 * 1024),
    )(*args)
    return out.reshape(N, H, W, C)


# ----------------------------- module logic ---------------------------------

def bifpn_layer_forward(params, inputs_nchw, target_size_list, num_outs, out_channels):
    assert len(inputs_nchw) == num_outs
    inputs = [jnp.transpose(x, (0, 2, 3, 1)).astype(jnp.float32) for x in inputs_nchw]

    md_x = []
    for i in range(num_outs - 1, 0, -1):                                  # top-down
        xs = ([md_x[-1], inputs[i - 1]] if i < num_outs - 1
              else [inputs[i], inputs[i - 1]])
        md_x.append(fused_weighted_merge(xs, params['td'][num_outs - 1 - i],
                                         target_size_list[i - 1], out_channels))
    outputs = md_x[::-1]
    for i in range(1, num_outs - 1):                                      # bottom-up
        outputs[i] = fused_weighted_merge(
            [outputs[i], inputs[i], outputs[i - 1]],
            params['bu'][i - 1], target_size_list[i], out_channels)
    outputs.append(fused_weighted_merge(
        [inputs[-1], outputs[-1]], params['bu'][-1],
        target_size_list[-1], out_channels))
    return [jnp.transpose(o, (0, 3, 1, 2)) for o in outputs]              # back to NCHW


# ----------------------------- parameter init -------------------------------

def _init_conv1x1(key, cin, cout):
    kw, kb = jax.random.split(key)
    return {'w': 0.1 * jax.random.normal(kw, (cin, cout), jnp.float32),
            'b': 0.1 * jax.random.normal(kb, (cout,), jnp.float32)}


def _init_weighted_merge(key, in_chs, cout):
    keys = jax.random.split(key, len(in_chs) + 3)
    resample = [None if cin == cout else _init_conv1x1(keys[i], cin, cout)
                for i, cin in enumerate(in_chs)]
    pw = _init_conv1x1(keys[-2], cout, cout)
    return {'w_merge': jnp.ones((len(in_chs),), jnp.float32),
            'resample': resample,
            'dw_w': 0.1 * jax.random.normal(keys[-3], (3, 3, cout), jnp.float32),
            'pw_w': pw['w'], 'pw_b': pw['b']}


def init_bifpn_layer(key, in_channels, out_channels, num_outs):
    kt, kb = jax.random.split(key)
    td_keys = jax.random.split(kt, num_outs - 1)
    bu_keys = jax.random.split(kb, num_outs - 1)
    td = []
    for idx, i in enumerate(range(num_outs - 1, 0, -1)):
        in_list = ([out_channels, in_channels[i - 1]] if i < num_outs - 1
                   else [in_channels[i], in_channels[i - 1]])
        td.append(_init_weighted_merge(td_keys[idx], in_list, out_channels))
    bu = []
    for i in range(num_outs - 1):
        in_list = ([out_channels, in_channels[i + 1], out_channels]
                   if i < num_outs - 2 else [in_channels[-1], out_channels])
        bu.append(_init_weighted_merge(bu_keys[i], in_list, out_channels))
    return {'td': td, 'bu': bu}


# ----------------------------- demo ------------------------------------------

if __name__ == "__main__":
    num_outs = 5
    in_channels = [8, 16, 24, 32, 40]
    out_channels = 16
    target_size_list = [32, 16, 8, 4, 2]
    batch = 2

    root = jax.random.PRNGKey(0)
    k_in, k_par = jax.random.split(root)
    in_keys = jax.random.split(k_in, num_outs)
    inputs = [jax.random.normal(
                  in_keys[i],
                  (batch, in_channels[i], target_size_list[i], target_size_list[i]),
                  jnp.float32)
              for i in range(num_outs)]

    params = init_bifpn_layer(k_par, in_channels, out_channels, num_outs)
    outs = bifpn_layer_forward(params, inputs, target_size_list, num_outs, out_channels)
    outs = jax.block_until_ready(outs)

    expected = [(batch, out_channels, s, s) for s in target_size_list]
    assert [tuple(o.shape) for o in outs] == expected, \
        f"bad shapes: {[o.shape for o in outs]}"
    assert all(bool(jnp.all(jnp.isfinite(o))) for o in outs)
    print("KERNEL_OK")
</pallas_src>

<mosaic_0001>
module attributes {stable_mosaic.version = 11 : i64} {
  func.func @kernel(%arg0: i32, %arg1: memref<2xf32, #tpu.memory_space<smem>>, %arg2: memref<1x2x80xf32, #tpu.memory_space<vmem>>, %arg3: memref<80x64xbf16, #tpu.memory_space<vmem>>, %arg4: memref<4x2xbf16, #tpu.memory_space<vmem>>, %arg5: memref<1x64xf32, #tpu.memory_space<vmem>>, %arg6: memref<1x4x128xf32, #tpu.memory_space<vmem>>, %arg7: memref<128x64xbf16, #tpu.memory_space<vmem>>, %arg8: memref<1x64xf32, #tpu.memory_space<vmem>>, %arg9: memref<3x4x4xbf16, #tpu.memory_space<vmem>>, %arg10: memref<3x64x64xbf16, #tpu.memory_space<vmem>>, %arg11: memref<64x64xbf16, #tpu.memory_space<vmem>>, %arg12: memref<1x64xf32, #tpu.memory_space<vmem>>, %arg13: memref<1x4x64xf32, #tpu.memory_space<vmem>>) attributes {dimension_semantics = [#tpu.dimension_semantics<parallel>], iteration_bounds = array<i64: 2>, scalar_prefetch = 0 : i64, scratch_operands = 0 : i64, tpu.core_type = #tpu.core_type<tc>, window_params = [{transform_indices = @transform_0, window_bounds = array<i64: 2>}, {transform_indices = @transform_1, window_bounds = array<i64: 1, 2, 80>}, {pipeline_mode = #tpu.pipeline_mode<synchronous>, transform_indices = @transform_2, window_bounds = array<i64: 80, 64>}, {pipeline_mode = #tpu.pipeline_mode<synchronous>, transform_indices = @transform_3, window_bounds = array<i64: 4, 2>}, {pipeline_mode = #tpu.pipeline_mode<synchronous>, transform_indices = @transform_4, window_bounds = array<i64: 1, 64>}, {transform_indices = @transform_5, window_bounds = array<i64: 1, 4, 128>}, {pipeline_mode = #tpu.pipeline_mode<synchronous>, transform_indices = @transform_6, window_bounds = array<i64: 128, 64>}, {pipeline_mode = #tpu.pipeline_mode<synchronous>, transform_indices = @transform_7, window_bounds = array<i64: 1, 64>}, {pipeline_mode = #tpu.pipeline_mode<synchronous>, transform_indices = @transform_8, window_bounds = array<i64: 3, 4, 4>}, {pipeline_mode = #tpu.pipeline_mode<synchronous>, transform_indices = @transform_9, window_bounds = array<i64: 3, 64, 64>}, {pipeline_mode = #tpu.pipeline_mode<synchronous>, transform_indices = @transform_10, window_bounds = array<i64: 64, 64>}, {pipeline_mode = #tpu.pipeline_mode<synchronous>, transform_indices = @transform_11, window_bounds = array<i64: 1, 64>}, {transform_indices = @transform_12, window_bounds = array<i64: 1, 4, 64>}]} {
    %c0 = arith.constant 0 : index
    %c0_0 = arith.constant 0 : index
    %c0_1 = arith.constant 0 : index
    %0 = vector.load %arg2[%c0, %c0_0, %c0_1] : memref<1x2x80xf32, #tpu.memory_space<vmem>>, vector<1x2x80xf32>
    %1 = vector.shape_cast %0 : vector<1x2x80xf32> to vector<2x80xf32>
    %2 = arith.truncf %1 : vector<2x80xf32> to vector<2x80xbf16>
    %c0_2 = arith.constant 0 : index
    %c0_3 = arith.constant 0 : index
    %3 = vector.load %arg3[%c0_2, %c0_3] : memref<80x64xbf16, #tpu.memory_space<vmem>>, vector<80x64xbf16>
    %c0_4 = arith.constant 0 : index
    %c0_5 = arith.constant 0 : index
    %4 = vector.load %arg4[%c0_4, %c0_5] : memref<4x2xbf16, #tpu.memory_space<vmem>>, vector<4x2xbf16>
    %cst = arith.constant dense<0.000000e+00> : vector<2x64xf32>
    %5 = tpu.matmul %2, %3, %cst {dimension_numbers = #tpu.dot_dimension_numbers<[1], [0], [0], [1], [0, 0, 1, 1], [], []>} : vector<2x80xbf16>, vector<80x64xbf16>, vector<2x64xf32> -> vector<2x64xf32>
    %6 = arith.truncf %5 : vector<2x64xf32> to vector<2x64xbf16>
    %cst_6 = arith.constant dense<0.000000e+00> : vector<4x64xf32>
    %7 = tpu.matmul %4, %6, %cst_6 {dimension_numbers = #tpu.dot_dimension_numbers<[1], [0], [0], [1], [0, 0, 1, 1], [], []>} : vector<4x2xbf16>, vector<2x64xbf16>, vector<4x64xf32> -> vector<4x64xf32>
    %c0_7 = arith.constant 0 : index
    %c0_8 = arith.constant 0 : index
    %8 = vector.load %arg5[%c0_7, %c0_8] : memref<1x64xf32, #tpu.memory_space<vmem>>, vector<1x64xf32>
    %9 = vector.broadcast %8 : vector<1x64xf32> to vector<4x64xf32>
    %10 = arith.addf %7, %9 : vector<4x64xf32>
    %c0_9 = arith.constant 0 : index
    %11 = memref.load %arg1[%c0_9] : memref<2xf32, #tpu.memory_space<smem>>
    %12 = vector.broadcast %11 : f32 to vector<4x64xf32>
    %13 = arith.mulf %12, %10 : vector<4x64xf32>
    %c0_10 = arith.constant 0 : index
    %c0_11 = arith.constant 0 : index
    %c0_12 = arith.constant 0 : index
    %14 = vector.load %arg6[%c0_10, %c0_11, %c0_12] : memref<1x4x128xf32, #tpu.memory_space<vmem>>, vector<1x4x128xf32>
    %15 = vector.shape_cast %14 : vector<1x4x128xf32> to vector<4x128xf32>
    %16 = arith.truncf %15 : vector<4x128xf32> to vector<4x128xbf16>
    %c0_13 = arith.constant 0 : index
    %c0_14 = arith.constant 0 : index
    %17 = vector.load %arg7[%c0_13, %c0_14] : memref<128x64xbf16, #tpu.memory_space<vmem>>, vector<128x64xbf16>
    %c0_15 = arith.constant 0 : index
    %c0_16 = arith.constant 0 : index
    %18 = vector.load %arg8[%c0_15, %c0_16] : memref<1x64xf32, #tpu.memory_space<vmem>>, vector<1x64xf32>
    %cst_17 = arith.constant dense<0.000000e+00> : vector<4x64xf32>
    %19 = tpu.matmul %16, %17, %cst_17 {dimension_numbers = #tpu.dot_dimension_numbers<[1], [0], [0], [1], [0, 0, 1, 1], [], []>} : vector<4x128xbf16>, vector<128x64xbf16>, vector<4x64xf32> -> vector<4x64xf32>
    %20 = vector.broadcast %18 : vector<1x64xf32> to vector<4x64xf32>
    %21 = arith.addf %19, %20 : vector<4x64xf32>
    %c1 = arith.constant 1 : index
    %22 = memref.load %arg1[%c1] : memref<2xf32, #tpu.memory_space<smem>>
    %23 = vector.broadcast %22 : f32 to vector<4x64xf32>
    %24 = arith.mulf %23, %21 : vector<4x64xf32>
    %25 = arith.addf %13, %24 : vector<4x64xf32>
    %26 = arith.negf %25 : vector<4x64xf32>
    %27 = math.exp %26 : vector<4x64xf32>
    %cst_18 = arith.constant 1.000000e+00 : f32
    %28 = vector.broadcast %cst_18 : f32 to vector<4x64xf32>
    %29 = arith.addf %28, %27 : vector<4x64xf32>
    %30 = arith.divf %28, %29 : vector<4x64xf32>
    %31 = arith.mulf %25, %30 : vector<4x64xf32>
    %32 = arith.truncf %31 : vector<4x64xf32> to vector<4x64xbf16>
    %c0_19 = arith.constant 0 : index
    %c0_20 = arith.constant 0 : index
    %33 = vector.load %arg11[%c0_19, %c0_20] : memref<64x64xbf16, #tpu.memory_space<vmem>>, vector<64x64xbf16>
    %c0_21 = arith.constant 0 : index
    %c0_22 = arith.constant 0 : index
    %34 = vector.load %arg12[%c0_21, %c0_22] : memref<1x64xf32, #tpu.memory_space<vmem>>, vector<1x64xf32>
    %c0_23 = arith.constant 0 : index
    %c0_24 = arith.constant 0 : index
    %c0_25 = arith.constant 0 : index
    %35 = vector.load %arg10[%c0_23, %c0_24, %c0_25] : memref<3x64x64xbf16, #tpu.memory_space<vmem>>, vector<1x64x64xbf16>
    %36 = vector.shape_cast %35 : vector<1x64x64xbf16> to vector<64x64xbf16>
    %cst_26 = arith.constant dense<0.000000e+00> : vector<4x64xf32>
    %37 = tpu.matmul %32, %36, %cst_26 {dimension_numbers = #tpu.dot_dimension_numbers<[1], [0], [0], [1], [0, 0, 1, 1], [], []>} : vector<4x64xbf16>, vector<64x64xbf16>, vector<4x64xf32> -> vector<4x64xf32>
    %c0_27 = arith.constant 0 : index
    %c0_28 = arith.constant 0 : index
    %c0_29 = arith.constant 0 : index
    %38 = vector.load %arg9[%c0_27, %c0_28, %c0_29] : memref<3x4x4xbf16, #tpu.memory_space<vmem>>, vector<1x4x4xbf16>
    %39 = vector.shape_cast %38 : vector<1x4x4xbf16> to vector<4x4xbf16>
    %40 = arith.truncf %37 : vector<4x64xf32> to vector<4x64xbf16>
    %cst_30 = arith.constant dense<0.000000e+00> : vector<4x64xf32>
    %41 = tpu.matmul %39, %40, %cst_30 {dimension_numbers = #tpu.dot_dimension_numbers<[1], [0], [0], [1], [0, 0, 1, 1], [], []>} : vector<4x4xbf16>, vector<4x64xbf16>, vector<4x64xf32> -> vector<4x64xf32>
    %c1_31 = arith.constant 1 : index
    %c0_32 = arith.constant 0 : index
    %c0_33 = arith.constant 0 : index
    %42 = vector.load %arg10[%c1_31, %c0_32, %c0_33] : memref<3x64x64xbf16, #tpu.memory_space<vmem>>, vector<1x64x64xbf16>
    %43 = vector.shape_cast %42 : vector<1x64x64xbf16> to vector<64x64xbf16>
    %cst_34 = arith.constant dense<0.000000e+00> : vector<4x64xf32>
    %44 = tpu.matmul %32, %43, %cst_34 {dimension_numbers = #tpu.dot_dimension_numbers<[1], [0], [0], [1], [0, 0, 1, 1], [], []>} : vector<4x64xbf16>, vector<64x64xbf16>, vector<4x64xf32> -> vector<4x64xf32>
    %c1_35 = arith.constant 1 : index
    %c0_36 = arith.constant 0 : index
    %c0_37 = arith.constant 0 : index
    %45 = vector.load %arg9[%c1_35, %c0_36, %c0_37] : memref<3x4x4xbf16, #tpu.memory_space<vmem>>, vector<1x4x4xbf16>
    %46 = vector.shape_cast %45 : vector<1x4x4xbf16> to vector<4x4xbf16>
    %47 = arith.truncf %44 : vector<4x64xf32> to vector<4x64xbf16>
    %cst_38 = arith.constant dense<0.000000e+00> : vector<4x64xf32>
    %48 = tpu.matmul %46, %47, %cst_38 {dimension_numbers = #tpu.dot_dimension_numbers<[1], [0], [0], [1], [0, 0, 1, 1], [], []>} : vector<4x4xbf16>, vector<4x64xbf16>, vector<4x64xf32> -> vector<4x64xf32>
    %49 = arith.addf %41, %48 : vector<4x64xf32>
    %c2 = arith.constant 2 : index
    %c0_39 = arith.constant 0 : index
    %c0_40 = arith.constant 0 : index
    %50 = vector.load %arg10[%c2, %c0_39, %c0_40] : memref<3x64x64xbf16, #tpu.memory_space<vmem>>, vector<1x64x64xbf16>
    %51 = vector.shape_cast %50 : vector<1x64x64xbf16> to vector<64x64xbf16>
    %cst_41 = arith.constant dense<0.000000e+00> : vector<4x64xf32>
    %52 = tpu.matmul %32, %51, %cst_41 {dimension_numbers = #tpu.dot_dimension_numbers<[1], [0], [0], [1], [0, 0, 1, 1], [], []>} : vector<4x64xbf16>, vector<64x64xbf16>, vector<4x64xf32> -> vector<4x64xf32>
    %c2_42 = arith.constant 2 : index
    %c0_43 = arith.constant 0 : index
    %c0_44 = arith.constant 0 : index
    %53 = vector.load %arg9[%c2_42, %c0_43, %c0_44] : memref<3x4x4xbf16, #tpu.memory_space<vmem>>, vector<1x4x4xbf16>
    %54 = vector.shape_cast %53 : vector<1x4x4xbf16> to vector<4x4xbf16>
    %55 = arith.truncf %52 : vector<4x64xf32> to vector<4x64xbf16>
    %cst_45 = arith.constant dense<0.000000e+00> : vector<4x64xf32>
    %56 = tpu.matmul %54, %55, %cst_45 {dimension_numbers = #tpu.dot_dimension_numbers<[1], [0], [0], [1], [0, 0, 1, 1], [], []>} : vector<4x4xbf16>, vector<4x64xbf16>, vector<4x64xf32> -> vector<4x64xf32>
    %57 = arith.addf %49, %56 : vector<4x64xf32>
    %58 = arith.truncf %57 : vector<4x64xf32> to vector<4x64xbf16>
    %cst_46 = arith.constant dense<0.000000e+00> : vector<4x64xf32>
    %59 = tpu.matmul %58, %33, %cst_46 {dimension_numbers = #tpu.dot_dimension_numbers<[1], [0], [0], [1], [0, 0, 1, 1], [], []>} : vector<4x64xbf16>, vector<64x64xbf16>, vector<4x64xf32> -> vector<4x64xf32>
    %60 = vector.broadcast %34 : vector<1x64xf32> to vector<4x64xf32>
    %61 = arith.addf %59, %60 : vector<4x64xf32>
    %c0_47 = arith.constant 0 : index
    %c0_48 = arith.constant 0 : index
    %c0_49 = arith.constant 0 : index
    %62 = vector.load %arg13[%c0_47, %c0_48, %c0_49] : memref<1x4x64xf32, #tpu.memory_space<vmem>>, vector<1x4x64xf32>
    %63 = vector.shape_cast %62 : vector<1x4x64xf32> to vector<4x64xf32>
    %64 = vector.shape_cast %61 : vector<4x64xf32> to vector<1x4x64xf32>
    tpu.vector_store %arg13[%c0_47, %c0_48, %c0_49], %64 {strides = array<i32>} : memref<1x4x64xf32, #tpu.memory_space<vmem>>, vector<1x4x64xf32>,
    return
  }
  func.func @transform_0(%arg0: i32) -> i32 {
    %c0_i32 = arith.constant 0 : i32
    %c0_i32_0 = arith.constant 0 : i32
    return %c0_i32 : i32
  }
  func.func @transform_1(%arg0: i32) -> (i32, i32, i32) {
    %c0_i32 = arith.constant 0 : i32
    %c0_i32_0 = arith.constant 0 : i32
    %c0_i32_1 = arith.constant 0 : i32
    return %arg0, %c0_i32, %c0_i32_0 : i32, i32, i32
  }
  func.func @transform_2(%arg0: i32) -> (i32, i32) {
    %c0_i32 = arith.constant 0 : i32
    %c0_i32_0 = arith.constant 0 : i32
    %c0_i32_1 = arith.constant 0 : i32
    return %c0_i32, %c0_i32_0 : i32, i32
  }
  func.func @transform_3(%arg0: i32) -> (i32, i32) {
    %c0_i32 = arith.constant 0 : i32
    %c0_i32_0 = arith.constant 0 : i32
    %c0_i32_1 = arith.constant 0 : i32
    return %c0_i32, %c0_i32_0 : i32, i32
  }
  func.func @transform_4(%arg0: i32) -> (i32, i32) {
    %c0_i32 = arith.constant 0 : i32
    %c0_i32_0 = arith.constant 0 : i32
    %c0_i32_1 = arith.constant 0 : i32
    return %c0_i32, %c0_i32_0 : i32, i32
  }
  func.func @transform_5(%arg0: i32) -> (i32, i32, i32) {
    %c0_i32 = arith.constant 0 : i32
    %c0_i32_0 = arith.constant 0 : i32
    %c0_i32_1 = arith.constant 0 : i32
    return %arg0, %c0_i32, %c0_i32_0 : i32, i32, i32
  }
  func.func @transform_6(%arg0: i32) -> (i32, i32) {
    %c0_i32 = arith.constant 0 : i32
    %c0_i32_0 = arith.constant 0 : i32
    %c0_i32_1 = arith.constant 0 : i32
    return %c0_i32, %c0_i32_0 : i32, i32
  }
  func.func @transform_7(%arg0: i32) -> (i32, i32) {
    %c0_i32 = arith.constant 0 : i32
    %c0_i32_0 = arith.constant 0 : i32
    %c0_i32_1 = arith.constant 0 : i32
    return %c0_i32, %c0_i32_0 : i32, i32
  }
  func.func @transform_8(%arg0: i32) -> (i32, i32, i32) {
    %c0_i32 = arith.constant 0 : i32
    %c0_i32_0 = arith.constant 0 : i32
    %c0_i32_1 = arith.constant 0 : i32
    %c0_i32_2 = arith.constant 0 : i32
    return %c0_i32, %c0_i32_0, %c0_i32_1 : i32, i32, i32
  }
  func.func @transform_9(%arg0: i32) -> (i32, i32, i32) {
    %c0_i32 = arith.constant 0 : i32
    %c0_i32_0 = arith.constant 0 : i32
    %c0_i32_1 = arith.constant 0 : i32
    %c0_i32_2 = arith.constant 0 : i32
    return %c0_i32, %c0_i32_0, %c0_i32_1 : i32, i32, i32
  }
  func.func @transform_10(%arg0: i32) -> (i32, i32) {
    %c0_i32 = arith.constant 0 : i32
    %c0_i32_0 = arith.constant 0 : i32
    %c0_i32_1 = arith.constant 0 : i32
    return %c0_i32, %c0_i32_0 : i32, i32
  }
  func.func @transform_11(%arg0: i32) -> (i32, i32) {
    %c0_i32 = arith.constant 0 : i32
    %c0_i32_0 = arith.constant 0 : i32
    %c0_i32_1 = arith.constant 0 : i32
    return %c0_i32, %c0_i32_0 : i32, i32
  }
  func.func @transform_12(%arg0: i32) -> (i32, i32, i32) {
    %c0_i32 = arith.constant 0 : i32
    %c0_i32_0 = arith.constant 0 : i32
    %c0_i32_1 = arith.constant 0 : i32
    return %arg0, %c0_i32, %c0_i32_0 : i32, i32, i32
  }
}

</mosaic_0001>

<llo_original>
// kernel: tpu_custom_call.1
$region0: #{tpu_custom_call.1}
  #allocation0 [shape = 'u32[]', space=smem, size = 0x4, offset = 0x4, fixed_abs, tag = 'smem constant byte address 0x4 - core index']
  #allocation1 [shape = 'u32[144,128]{1,0:T(1,128)}', space=vmem, size = 0x12000, scoped, tag = 'internal scratch']
  %s0 = inlined_call_operand.vmem [shape: f32[2], index: 0, kind: input, shape index: {}]
  %s1 = inlined_call_operand.vmem [shape: f32[2,2,80], index: 1, kind: input, shape index: {}]
  %s2 = inlined_call_operand.vmem [shape: bf16[80,64], index: 2, kind: input, shape index: {}]
  %s3 = inlined_call_operand.vmem [shape: bf16[4,2], index: 3, kind: input, shape index: {}]
  %s4 = inlined_call_operand.vmem [shape: f32[1,64], index: 4, kind: input, shape index: {}]
  %s5 = inlined_call_operand.vmem [shape: f32[2,4,128], index: 5, kind: input, shape index: {}]
  %s6 = inlined_call_operand.vmem [shape: bf16[128,64], index: 6, kind: input, shape index: {}]
  %s7 = inlined_call_operand.vmem [shape: f32[1,64], index: 7, kind: input, shape index: {}]
  %s8 = inlined_call_operand.vmem [shape: bf16[3,4,4], index: 8, kind: input, shape index: {}]
  %s9 = inlined_call_operand.vmem [shape: bf16[3,64,64], index: 9, kind: input, shape index: {}]
  %s10 = inlined_call_operand.vmem [shape: bf16[64,64], index: 10, kind: input, shape index: {}]
  %s11 = inlined_call_operand.vmem [shape: f32[1,64], index: 11, kind: input, shape index: {}]
  %s12 = inlined_call_operand.hbm [shape: f32[2,4,64], index: 12, kind: output, shape index: {}]
  %s13 = sld [smem:[#allocation0]]
  $region85: #{tpu_custom_call.1} parent=0
    _
  %s15 = ssub.s32 1, %s13
  %s16 = scalar_select 0, %s15, %s13
  $region1: #{tpu_custom_call.1} parent=0
    #allocation2 [shape = 'u8[512]{0}', space=smem, size = 0x200, scoped, tag = 'input window, operand 0, single buffered']
    #allocation3 [shape = 's32[2]{0}', space=sflag, size = 0x8, scoped, tag = 'scoped memory for tpu_custom_call.1']
    #allocation4 [shape = 's32[2]{0}', space=sflag, size = 0x8, scoped, tag = 'scoped memory for tpu_custom_call.1']
    #allocation5 [shape = 'u8[4096]{0}', space=vmem, size = 0x1000, scoped, tag = 'output window, operand 0']
    %17 = vsyncpa [#allocation4], 0
    %18 = vsyncpa [#allocation3], 0
    %s19 = scalar_lea.sflag [#allocation3], 1
    %20 = vsyncpa %s19, 0
    loop: start=0, step=1, limit=4
    $region2: #{tpu_custom_call.1} parent=1 // loop_pre_header
      _
    $region3: #{tpu_custom_call.1} parent=1 // loop_header
      %s22 = sphi 0, %s26
      %p23 = scmp.ge.s32.totalorder %s22, 4
      %s30 = sphi 0, %s30
      %s32 = sphi 0, %s30
      %s33 = sphi 0, %s32
      %s47 = sphi 0, %s33
      %s53 = sphi 0, %s55
      %s56 = sphi 0, %s53
      %s57 = sphi 0, %s56
      %s73 = sphi 0, %s57
      %s77 = sphi 0, %s77
      %s79 = sphi 0, %s77
      %s80 = sphi 0, %s79
      %s94 = sphi 0, %s80
      %s98 = sphi 0, %s98
      %s100 = sphi 0, %s98
      %s101 = sphi 0, %s100
      %s115 = sphi 0, %s101
      %s119 = sphi 0, %s119
      %s121 = sphi 0, %s119
      %s122 = sphi 0, %s121
      %s136 = sphi 0, %s122
      %s142 = sphi 0, %s144
      %s145 = sphi 0, %s142
      %s146 = sphi 0, %s145
      %s162 = sphi 0, %s146
      %s166 = sphi 0, %s166
      %s168 = sphi 0, %s166
      %s169 = sphi 0, %s168
      %s183 = sphi 0, %s169
      %s187 = sphi 0, %s187
      %s189 = sphi 0, %s187
      %s190 = sphi 0, %s189
      %s204 = sphi 0, %s190
      %s208 = sphi 0, %s208
      %s210 = sphi 0, %s208
      %s211 = sphi 0, %s210
      %s225 = sphi 0, %s211
      %s229 = sphi 0, %s229
      %s231 = sphi 0, %s229
      %s232 = sphi 0, %s231
      %s246 = sphi 0, %s232
      %s250 = sphi 0, %s250
      %s252 = sphi 0, %s250
      %s253 = sphi 0, %s252
      %s267 = sphi 0, %s253
      %s271 = sphi 0, %s271
      %s273 = sphi 0, %s271
      %s274 = sphi 0, %s273
      %s288 = sphi 0, %s274
      %s294 = sphi 0, %s296
      %s297 = sphi 0, %s294
      %s298 = sphi 0, %s297
      %s314 = sphi 0, %s298
    $region4: #{tpu_custom_call.1} parent=1 // loop_header_branch
      %25 = sbr.rel (%p23) target = $region8
    $region5: #{tpu_custom_call.1} parent=1 // loop_body
      %s27 = ssub.s32 %s22, 1
      %s28 = ssub.s32 %s22, 2
      %s29 = sadd.s32 %s22, 1
      %s31 = sadd.s32 %s30, 1
      %p34 = scmp.eq.s32.totalorder %s22, 1
      %p35 = scmp.ne.s32.totalorder %s30, %s32
      %p36 = scmp.eq.s32.totalorder %s22, 0
      %p37 = por %p35, %p36
      %p38 = scmp.ne.s32.totalorder %s30, %s32
      %p39 = scmp.eq.s32.totalorder %s27, 1
      %p40 = por %p38, %p39
      %p41 = scmp.ne.s32.totalorder %s32, %s33
      %p42 = scmp.eq.s32.totalorder %s27, 0
      %p43 = por %p41, %p42
      %p44 = scmp.ne.s32.totalorder %s32, %s33
      %p45 = scmp.eq.s32.totalorder %s28, 1
      %p46 = por %p44, %p45
      %p48 = scmp.ne.s32.totalorder %s33, %s47
      %p49 = scmp.eq.s32.totalorder %s28, 0
      %p50 = por %p48, %p49
      %s51 = ssub.s32 %s22, %s29
      %p52 = scmp.eq.s32.totalorder %s51, 0
      %s54 = sadd.s32 %s53, 1
      %s55 = scalar_select %p52, %s53, %s54
      %p58 = pneg %p52
      %p59 = scmp.eq.s32.totalorder %s22, 1
      %p60 = por %p58, %p59
      %p61 = scmp.ne.s32.totalorder %s53, %s56
      %p62 = scmp.eq.s32.totalorder %s22, 0
      %p63 = por %p61, %p62
      %p64 = scmp.ne.s32.totalorder %s53, %s56
      %p65 = scmp.eq.s32.totalorder %s27, 1
      %p66 = por %p64, %p65
      %p67 = scmp.ne.s32.totalorder %s56, %s57
      %p68 = scmp.eq.s32.totalorder %s27, 0
      %p69 = por %p67, %p68
      %p70 = scmp.ne.s32.totalorder %s56, %s57
      %p71 = scmp.eq.s32.totalorder %s28, 1
      %p72 = por %p70, %p71
      %p74 = scmp.ne.s32.totalorder %s57, %s73
      %p75 = scmp.eq.s32.totalorder %s28, 0
      %p76 = por %p74, %p75
      %s78 = sadd.s32 %s77, 1
      %p81 = scmp.eq.s32.totalorder %s22, 1
      %p82 = scmp.ne.s32.totalorder %s77, %s79
      %p83 = scmp.eq.s32.totalorder %s22, 0
      %p84 = por %p82, %p83
      %p85 = scmp.ne.s32.totalorder %s77, %s79
      %p86 = scmp.eq.s32.totalorder %s27, 1
      %p87 = por %p85, %p86
      %p88 = scmp.ne.s32.totalorder %s79, %s80
      %p89 = scmp.eq.s32.totalorder %s27, 0
      %p90 = por %p88, %p89
      %p91 = scmp.ne.s32.totalorder %s79, %s80
      %p92 = scmp.eq.s32.totalorder %s28, 1
      %p93 = por %p91, %p92
      %p95 = scmp.ne.s32.totalorder %s80, %s94
      %p96 = scmp.eq.s32.totalorder %s28, 0
      %p97 = por %p95, %p96
      %s99 = sadd.s32 %s98, 1
      %p102 = scmp.eq.s32.totalorder %s22, 1
      %p103 = scmp.ne.s32.totalorder %s98, %s100
      %p104 = scmp.eq.s32.totalorder %s22, 0
      %p105 = por %p103, %p104
      %p106 = scmp.ne.s32.totalorder %s98, %s100
      %p107 = scmp.eq.s32.totalorder %s27, 1
      %p108 = por %p106, %p107
      %p109 = scmp.ne.s32.totalorder %s100, %s101
      %p110 = scmp.eq.s32.totalorder %s27, 0
      %p111 = por %p109, %p110
      %p112 = scmp.ne.s32.totalorder %s100, %s101
      %p113 = scmp.eq.s32.totalorder %s28, 1
      %p114 = por %p112, %p113
      %p116 = scmp.ne.s32.totalorder %s101, %s115
      %p117 = scmp.eq.s32.totalorder %s28, 0
      %p118 = por %p116, %p117
      %s120 = sadd.s32 %s119, 1
      %p123 = scmp.eq.s32.totalorder %s22, 1
      %p124 = scmp.ne.s32.totalorder %s119, %s121
      %p125 = scmp.eq.s32.totalorder %s22, 0
      %p126 = por %p124, %p125
      %p127 = scmp.ne.s32.totalorder %s119, %s121
      %p128 = scmp.eq.s32.totalorder %s27, 1
      %p129 = por %p127, %p128
      %p130 = scmp.ne.s32.totalorder %s121, %s122
      %p131 = scmp.eq.s32.totalorder %s27, 0
      %p132 = por %p130, %p131
      %p133 = scmp.ne.s32.totalorder %s121, %s122
      %p134 = scmp.eq.s32.totalorder %s28, 1
      %p135 = por %p133, %p134
      %p137 = scmp.ne.s32.totalorder %s122, %s136
      %p138 = scmp.eq.s32.totalorder %s28, 0
      %p139 = por %p137, %p138
      %s140 = ssub.s32 %s22, %s29
      %p141 = scmp.eq.s32.totalorder %s140, 0
      %s143 = sadd.s32 %s142, 1
      %s144 = scalar_select %p141, %s142, %s143
      %p147 = pneg %p141
      %p148 = scmp.eq.s32.totalorder %s22, 1
      %p149 = por %p147, %p148
      %p150 = scmp.ne.s32.totalorder %s142, %s145
      %p151 = scmp.eq.s32.totalorder %s22, 0
      %p152 = por %p150, %p151
      %p153 = scmp.ne.s32.totalorder %s142, %s145
      %p154 = scmp.eq.s32.totalorder %s27, 1
      %p155 = por %p153, %p154
      %p156 = scmp.ne.s32.totalorder %s145, %s146
      %p157 = scmp.eq.s32.totalorder %s27, 0
      %p158 = por %p156, %p157
      %p159 = scmp.ne.s32.totalorder %s145, %s146
      %p160 = scmp.eq.s32.totalorder %s28, 1
      %p161 = por %p159, %p160
      %p163 = scmp.ne.s32.totalorder %s146, %s162
      %p164 = scmp.eq.s32.totalorder %s28, 0
      %p165 = por %p163, %p164
      %s167 = sadd.s32 %s166, 1
      %p170 = scmp.eq.s32.totalorder %s22, 1
      %p171 = scmp.ne.s32.totalorder %s166, %s168
      %p172 = scmp.eq.s32.totalorder %s22, 0
      %p173 = por %p171, %p172
      %p174 = scmp.ne.s32.totalorder %s166, %s168
      %p175 = scmp.eq.s32.totalorder %s27, 1
      %p176 = por %p174, %p175
      %p177 = scmp.ne.s32.totalorder %s168, %s169
      %p178 = scmp.eq.s32.totalorder %s27, 0
      %p179 = por %p177, %p178
      %p180 = scmp.ne.s32.totalorder %s168, %s169
      %p181 = scmp.eq.s32.totalorder %s28, 1
      %p182 = por %p180, %p181
      %p184 = scmp.ne.s32.totalorder %s169, %s183
      %p185 = scmp.eq.s32.totalorder %s28, 0
      %p186 = por %p184, %p185
      %s188 = sadd.s32 %s187, 1
      %p191 = scmp.eq.s32.totalorder %s22, 1
      %p192 = scmp.ne.s32.totalorder %s187, %s189
      %p193 = scmp.eq.s32.totalorder %s22, 0
      %p194 = por %p192, %p193
      %p195 = scmp.ne.s32.totalorder %s187, %s189
      %p196 = scmp.eq.s32.totalorder %s27, 1
      %p197 = por %p195, %p196
      %p198 = scmp.ne.s32.totalorder %s189, %s190
      %p199 = scmp.eq.s32.totalorder %s27, 0
      %p200 = por %p198, %p199
      %p201 = scmp.ne.s32.totalorder %s189, %s190
      %p202 = scmp.eq.s32.totalorder %s28, 1
      %p203 = por %p201, %p202
      %p205 = scmp.ne.s32.totalorder %s190, %s204
      %p206 = scmp.eq.s32.totalorder %s28, 0
      %p207 = por %p205, %p206
      %s209 = sadd.s32 %s208, 1
      %p212 = scmp.eq.s32.totalorder %s22, 1
      %p213 = scmp.ne.s32.totalorder %s208, %s210
      %p214 = scmp.eq.s32.totalorder %s22, 0
      %p215 = por %p213, %p214
      %p216 = scmp.ne.s32.totalorder %s208, %s210
      %p217 = scmp.eq.s32.totalorder %s27, 1
      %p218 = por %p216, %p217
      %p219 = scmp.ne.s32.totalorder %s210, %s211
      %p220 = scmp.eq.s32.totalorder %s27, 0
      %p221 = por %p219, %p220
      %p222 = scmp.ne.s32.totalorder %s210, %s211
      %p223 = scmp.eq.s32.totalorder %s28, 1
      %p224 = por %p222, %p223
      %p226 = scmp.ne.s32.totalorder %s211, %s225
      %p227 = scmp.eq.s32.totalorder %s28, 0
      %p228 = por %p226, %p227
      %s230 = sadd.s32 %s229, 1
      %p233 = scmp.eq.s32.totalorder %s22, 1
      %p234 = scmp.ne.s32.totalorder %s229, %s231
      %p235 = scmp.eq.s32.totalorder %s22, 0
      %p236 = por %p234, %p235
      %p237 = scmp.ne.s32.totalorder %s229, %s231
      %p238 = scmp.eq.s32.totalorder %s27, 1
      %p239 = por %p237, %p238
      %p240 = scmp.ne.s32.totalorder %s231, %s232
      %p241 = scmp.eq.s32.totalorder %s27, 0
      %p242 = por %p240, %p241
      %p243 = scmp.ne.s32.totalorder %s231, %s232
      %p244 = scmp.eq.s32.totalorder %s28, 1
      %p245 = por %p243, %p244
      %p247 = scmp.ne.s32.totalorder %s232, %s246
      %p248 = scmp.eq.s32.totalorder %s28, 0
      %p249 = por %p247, %p248
      %s251 = sadd.s32 %s250, 1
      %p254 = scmp.eq.s32.totalorder %s22, 1
      %p255 = scmp.ne.s32.totalorder %s250, %s252
      %p256 = scmp.eq.s32.totalorder %s22, 0
      %p257 = por %p255, %p256
      %p258 = scmp.ne.s32.totalorder %s250, %s252
      %p259 = scmp.eq.s32.totalorder %s27, 1
      %p260 = por %p258, %p259
      %p261 = scmp.ne.s32.totalorder %s252, %s253
      %p262 = scmp.eq.s32.totalorder %s27, 0
      %p263 = por %p261, %p262
      %p264 = scmp.ne.s32.totalorder %s252, %s253
      %p265 = scmp.eq.s32.totalorder %s28, 1
      %p266 = por %p264, %p265
      %p268 = scmp.ne.s32.totalorder %s253, %s267
      %p269 = scmp.eq.s32.totalorder %s28, 0
      %p270 = por %p268, %p269
      %s272 = sadd.s32 %s271, 1
      %p275 = scmp.eq.s32.totalorder %s22, 1
      %p276 = scmp.ne.s32.totalorder %s271, %s273
      %p277 = scmp.eq.s32.totalorder %s22, 0
      %p278 = por %p276, %p277
      %p279 = scmp.ne.s32.totalorder %s271, %s273
      %p280 = scmp.eq.s32.totalorder %s27, 1
      %p281 = por %p279, %p280
      %p282 = scmp.ne.s32.totalorder %s273, %s274
      %p283 = scmp.eq.s32.totalorder %s27, 0
      %p284 = por %p282, %p283
      %p285 = scmp.ne.s32.totalorder %s273, %s274
      %p286 = scmp.eq.s32.totalorder %s28, 1
      %p287 = por %p285, %p286
      %p289 = scmp.ne.s32.totalorder %s274, %s288
      %p290 = scmp.eq.s32.totalorder %s28, 0
      %p291 = por %p289, %p290
      %s292 = ssub.s32 %s22, %s29
      %p293 = scmp.eq.s32.totalorder %s292, 0
      %s295 = sadd.s32 %s294, 1
      %s296 = scalar_select %p293, %s294, %s295
      %p299 = pneg %p293
      %p300 = scmp.eq.s32.totalorder %s22, 1
      %p301 = por %p299, %p300
      %p302 = scmp.ne.s32.totalorder %s294, %s297
      %p303 = scmp.eq.s32.totalorder %s22, 0
      %p304 = por %p302, %p303
      %p305 = scmp.ne.s32.totalorder %s294, %s297
      %p306 = scmp.eq.s32.totalorder %s27, 1
      %p307 = por %p305, %p306
      %p308 = scmp.ne.s32.totalorder %s297, %s298
      %p309 = scmp.eq.s32.totalorder %s27, 0
      %p310 = por %p308, %p309
      %p311 = scmp.ne.s32.totalorder %s297, %s298
      %p312 = scmp.eq.s32.totalorder %s28, 1
      %p313 = por %p311, %p312
      %p315 = scmp.ne.s32.totalorder %s298, %s314
      %p316 = scmp.eq.s32.totalorder %s28, 0
      %p317 = por %p315, %p316
      %p318 = scmp.le.s32.totalorder 1, %s22
      %p319 = scmp.lt.s32.totalorder %s22, 3
      %p320 = pnand %p318, %p319
      %p321 = pneg %p320
      // Predicated region
      $region9: #{tpu_custom_call.1} parent=5 // pred_check
        _
      $region10: #{tpu_custom_call.1} parent=5 // pred_check_branch
        %323 = sbr.rel (%p320) target = $region12
      $region11: #{tpu_custom_call.1} parent=5 // pred_region
        %s324 = ssub.s32 %s22, 1
        // Predicated region
        $region13: #{tpu_custom_call.1} parent=11 // pred_check
          %p325 = pneg %p43
        $region14: #{tpu_custom_call.1} parent=11 // pred_check_branch
          %327 = sbr.rel (%p325) target = $region16
        $region15: #{tpu_custom_call.1} parent=11 // pred_region
          %s329 = ssub.s32 16, 16
          %330 = vsyncadd [#allocation4], %s329
          %s332 = sshll.u32 %s0, 4
          %s333 = int_to_ptr.vmem [resolvable:$true] %s332
          %335 = dma.vmem_to_smem %s333, 16, [#allocation2], [#allocation4]
        $region16: #{tpu_custom_call.1} parent=11 // pred_fallthru
          _
        // Predicated region
        $region17: #{tpu_custom_call.1} parent=11 // pred_check
          %p336 = pneg %p90
        $region18: #{tpu_custom_call.1} parent=11 // pred_check_branch
          %338 = sbr.rel (%p336) target = $region20
        $region19: #{tpu_custom_call.1} parent=11 // pred_region
          _
        $region20: #{tpu_custom_call.1} parent=11 // pred_fallthru
          _
        // Predicated region
        $region21: #{tpu_custom_call.1} parent=11 // pred_check
          %p339 = pneg %p111
        $region22: #{tpu_custom_call.1} parent=11 // pred_check_branch
          %341 = sbr.rel (%p339) target = $region24
        $region23: #{tpu_custom_call.1} parent=11 // pred_region
          _
        $region24: #{tpu_custom_call.1} parent=11 // pred_fallthru
          _
        // Predicated region
        $region25: #{tpu_custom_call.1} parent=11 // pred_check
          %p342 = pneg %p132
        $region26: #{tpu_custom_call.1} parent=11 // pred_check_branch
          %344 = sbr.rel (%p342) target = $region28
        $region27: #{tpu_custom_call.1} parent=11 // pred_region
          _
        $region28: #{tpu_custom_call.1} parent=11 // pred_fallthru
          _
        // Predicated region
        $region29: #{tpu_custom_call.1} parent=11 // pred_check
          %p345 = pneg %p179
        $region30: #{tpu_custom_call.1} parent=11 // pred_check_branch
          %347 = sbr.rel (%p345) target = $region32
        $region31: #{tpu_custom_call.1} parent=11 // pred_region
          _
        $region32: #{tpu_custom_call.1} parent=11 // pred_fallthru
          _
        // Predicated region
        $region33: #{tpu_custom_call.1} parent=11 // pred_check
          %p348 = pneg %p200
        $region34: #{tpu_custom_call.1} parent=11 // pred_check_branch
          %350 = sbr.rel (%p348) target = $region36
        $region35: #{tpu_custom_call.1} parent=11 // pred_region
          _
        $region36: #{tpu_custom_call.1} parent=11 // pred_fallthru
          _
        // Predicated region
        $region37: #{tpu_custom_call.1} parent=11 // pred_check
          %p351 = pneg %p221
        $region38: #{tpu_custom_call.1} parent=11 // pred_check_branch
          %353 = sbr.rel (%p351) target = $region40
        $region39: #{tpu_custom_call.1} parent=11 // pred_region
          _
        $region40: #{tpu_custom_call.1} parent=11 // pred_fallthru
          _
        // Predicated region
        $region41: #{tpu_custom_call.1} parent=11 // pred_check
          %p354 = pneg %p242
        $region42: #{tpu_custom_call.1} parent=11 // pred_check_branch
          %356 = sbr.rel (%p354) target = $region44
        $region43: #{tpu_custom_call.1} parent=11 // pred_region
          _
        $region44: #{tpu_custom_call.1} parent=11 // pred_fallthru
          _
        // Predicated region
        $region45: #{tpu_custom_call.1} parent=11 // pred_check
          %p357 = pneg %p263
        $region46: #{tpu_custom_call.1} parent=11 // pred_check_branch
          %359 = sbr.rel (%p357) target = $region48
        $region47: #{tpu_custom_call.1} parent=11 // pred_region
          _
        $region48: #{tpu_custom_call.1} parent=11 // pred_fallthru
          _
        // Predicated region
        $region49: #{tpu_custom_call.1} parent=11 // pred_check
          %p360 = pneg %p284
        $region50: #{tpu_custom_call.1} parent=11 // pred_check_branch
          %362 = sbr.rel (%p360) target = $region52
        $region51: #{tpu_custom_call.1} parent=11 // pred_region
          _
        $region52: #{tpu_custom_call.1} parent=11 // pred_fallthru
          _
      $region12: #{tpu_custom_call.1} parent=5 // pred_fallthru
        _
      %p363 = scmp.lt.s32.totalorder %s22, 2
      // Predicated region
      $region53: #{tpu_custom_call.1} parent=5 // pred_check
        %p364 = pneg %p363
      $region54: #{tpu_custom_call.1} parent=5 // pred_check_branch
        %366 = sbr.rel (%p364) target = $region56
      $region55: #{tpu_custom_call.1} parent=5 // pred_region
        // Predicated region
        $region57: #{tpu_custom_call.1} parent=55 // pred_check
          %p367 = pneg %p63
        $region58: #{tpu_custom_call.1} parent=55 // pred_check_branch
          %369 = sbr.rel (%p367) target = $region60
        $region59: #{tpu_custom_call.1} parent=55 // pred_region
          %p370 = scmp.lt.s32.totalorder %s22, 1
          %s371 = scalar_select %p370, %s22, 1
          %s372 = smul.addr %s371, 2
          %s373 = scalar_lea.vmem %s1, %s372
        $region60: #{tpu_custom_call.1} parent=55 // pred_fallthru
          _
        // Predicated region
        $region61: #{tpu_custom_call.1} parent=55 // pred_check
          %p374 = pneg %p152
        $region62: #{tpu_custom_call.1} parent=55 // pred_check_branch
          %376 = sbr.rel (%p374) target = $region64
        $region63: #{tpu_custom_call.1} parent=55 // pred_region
          %p377 = scmp.lt.s32.totalorder %s22, 1
          %s378 = scalar_select %p377, %s22, 1
          %s379 = smul.addr %s378, 4
          %s380 = scalar_lea.vmem %s5, %s379
        $region64: #{tpu_custom_call.1} parent=55 // pred_fallthru
          _
      $region56: #{tpu_custom_call.1} parent=5 // pred_fallthru
        _
      %p381 = scmp.le.s32.totalorder 1, %s22
      %p382 = scmp.lt.s32.totalorder %s22, 3
      %p383 = pnand %p381, %p382
      %p384 = pneg %p383
      // Predicated region
      $region65: #{tpu_custom_call.1} parent=5 // pred_check
        _
      $region66: #{tpu_custom_call.1} parent=5 // pred_check_branch
        %386 = sbr.rel (%p383) target = $region68
      $region67: #{tpu_custom_call.1} parent=5 // pred_region
        %s387 = ssub.s32 %s22, 1
        // Predicated region
        $region69: #{tpu_custom_call.1} parent=67 // pred_check
          %p388 = pneg %p43
        $region70: #{tpu_custom_call.1} parent=67 // pred_check_branch
          %390 = sbr.rel (%p388) target = $region72
        $region71: #{tpu_custom_call.1} parent=67 // pred_region
          %391 = dma.done [#allocation4], 16
        $region72: #{tpu_custom_call.1} parent=67 // pred_fallthru
          _
        %392 = sfence
        %p393 = pneg %p43
        %p394 = pneg %p40
        %p395 = scmp.lt.s32.totalorder %s27, 1
        %s396 = scalar_select %p395, %s27, 1
        %s397 = smul.addr %s396, 2
        %s398 = scalar_lea.vmem %s1, %s397
        %p399 = pneg %p69
        %p400 = pneg %p66
        %p401 = pneg %p90
        %p402 = pneg %p87
        %p403 = pneg %p111
        %p404 = pneg %p108
        %p405 = pneg %p132
        %p406 = pneg %p129
        %p407 = scmp.lt.s32.totalorder %s27, 1
        %s408 = scalar_select %p407, %s27, 1
        %s409 = smul.addr %s408, 4
        %s410 = scalar_lea.vmem %s5, %s409
        %p411 = pneg %p158
        %p412 = pneg %p155
        %p413 = pneg %p179
        %p414 = pneg %p176
        %p415 = pneg %p200
        %p416 = pneg %p197
        %p417 = pneg %p221
        %p418 = pneg %p218
        %p419 = pneg %p242
        %p420 = pneg %p239
        %p421 = pneg %p263
        %p422 = pneg %p260
        %p423 = pneg %p284
        %p424 = pneg %p281
        %p425 = pneg %p310
        %p426 = pneg %p307
        %s427 = sand.u32 %s297, 1
        %s428 = scalar_lea.sflag [#allocation3], %s427
        %s429 = sand.u32 %s297, 1
        %s430 = smul.addr %s429, 4
        %s431 = scalar_lea.vmem [#allocation5], %s430
        %p432 = scmp.lt.s32.totalorder %s27, 1
        %s433 = scalar_select %p432, %s27, 1
        %s434 = smul.addr %s433, 2
        %s435 = scalar_lea.vmem %s1, %s434
        %p436 = scmp.lt.s32.totalorder %s27, 1
        %s437 = scalar_select %p436, %s27, 1
        %s438 = smul.addr %s437, 4
        %s439 = scalar_lea.vmem %s5, %s438
        %v441 = vld [vmem:[%s435] sm:$0x3]
        %v442 = vpack.c.bf16 %v441, %v441
        %v443 = vld [vmem:[%s2] sm:$0xf]
        %v444 = vld [vmem:[%s2 + $0x4] sm:$0xf]
        %v445 = vld [vmem:[%s2 + $0x8] sm:$0xf]
        %v446 = vld [vmem:[%s2 + $0xc] sm:$0xf]
        %v447 = vld [vmem:[%s2 + $0x10] sm:$0xf]
        %v448 = vld [vmem:[%s2 + $0x14] sm:$0xf]
        %v449 = vld [vmem:[%s2 + $0x18] sm:$0xf]
        %v450 = vld [vmem:[%s2 + $0x1c] sm:$0xf]
        %v451 = vld [vmem:[%s2 + $0x20] sm:$0xf]
        %v452 = vld [vmem:[%s2 + $0x24] sm:$0xf]
        %v453 = vld [vmem:[%s3] sm:$0x3]
        %v464 = vunpack.c.l.b16 %v443
        %v465 = vunpack.c.l.b16 %v444
        %v466 = vunpack.c.l.b16 %v445
        %v467 = vunpack.c.l.b16 %v446
        %v468 = vunpack.c.l.b16 %v447
        %v469 = vunpack.c.l.b16 %v448
        %v470 = vunpack.c.l.b16 %v449
        %v471 = vunpack.c.l.b16 %v450
        %v472 = vunpack.c.l.b16 %v451
        %v473 = vunpack.c.l.b16 %v452
        %v474 = vpack.c.b16 %v465, %v464
        %v475 = vpack.c.b16 %v467, %v466
        %v476 = vpack.c.b16 %v469, %v468
        %v477 = vpack.c.b16 %v471, %v470
        %v478 = vpack.c.b16 %v473, %v472
        %vm484 = vcmask 654336
        %v486 = vsel %vm484, %v442, 0
        %488 = vmatprep.subr.bf16.mxu0 0
        %489 = vmatpush1.bf16.msra.mxu0 0
        %490 = vmatprep.subr.bf16.mxu0 0
        %491 = vmatpush1.bf16.msra.mxu0 0
        %492 = vmatprep.subr.bf16.mxu0 0
        %493 = vmatpush1.bf16.msra.mxu0 0
        %494 = vmatprep.subr.bf16.mxu0 0
        %495 = vmatpush1.bf16.msra.mxu0 %v478
        %496 = vmatprep.subr.bf16.mxu0 0
        %497 = vmatpush1.bf16.msra.mxu0 %v477
        %498 = vmatprep.subr.bf16.mxu0 0
        %499 = vmatpush1.bf16.msra.mxu0 %v476
        %500 = vmatprep.subr.bf16.mxu0 0
        %501 = vmatpush1.bf16.msra.mxu0 %v475
        %502 = vmatprep.subr.bf16.mxu0 0
        %503 = vmatpush1.bf16.msra.mxu0 %v474
        %504 = vmatprep.subr.bf16.mxu0 0
        %505 = vmatpush2.bf16.msra.mxu0 0
        %506 = vmatprep.subr.bf16.mxu0 0
        %507 = vmatpush2.bf16.msra.mxu0 0
        %508 = vmatprep.subr.bf16.mxu0 0
        %509 = vmatpush2.bf16.msra.mxu0 0
        %510 = vmatprep.subr.bf16.mxu0 0
        %511 = vmatpush2.bf16.msra.mxu0 0
        %512 = vmatprep.subr.bf16.mxu0 0
        %513 = vmatpush2.bf16.msra.mxu0 0
        %514 = vmatprep.subr.bf16.mxu0 0
        %515 = vmatpush2.bf16.msra.mxu0 0
        %516 = vmatprep.subr.bf16.mxu0 0
        %517 = vmatpush2.bf16.msra.mxu0 0
        %518 = vmatprep.subr.bf16.mxu0 0
        %519 = vmatpush2.bf16.msra.mxu0 0
        %520 = vmatprep.mubr.bf16.mxu0 0
        %521 = vmatmul.mubr.bf16.gmra.mxu0 %v486
        %v522 = vpop.f32.mrf.mxu0
        %v523 = vadd.f32 0.0, %v522
        %v524 = vpop.f32.mrf.mxu0
        %v525 = vpop.f32.mrf.mxu0
        %v526 = vpop.f32.mrf.mxu0
        %527 = vdwg.mxu0
        %v528 = vpack.c.bf16 %v523, %v523
        %v529 = vld [vmem:[%s4] sm:$0x1]
        %v531 = vlaneseq
        %v532 = vshrl.u32 %v531, 7
        %v533 = vsub.s32 0, %v532
        %v534 = vrot.slane %v529, %v533
        %vm536 = vcmask 15360
        %v538 = vsel %vm536, %v453, 0
        %vm540 = vcmask 1040384
        %v542 = vsel %vm540, %v528, 0
        %544 = vmatprep.subr.bf16.mxu0 0
        %545 = vmatpush1.bf16.msra.mxu0 0
        %546 = vmatprep.subr.bf16.mxu0 0
        %547 = vmatpush1.bf16.msra.mxu0 0
        %548 = vmatprep.subr.bf16.mxu0 0
        %549 = vmatpush1.bf16.msra.mxu0 0
        %550 = vmatprep.subr.bf16.mxu0 0
        %551 = vmatpush1.bf16.msra.mxu0 0
        %552 = vmatprep.subr.bf16.mxu0 0
        %553 = vmatpush1.bf16.msra.mxu0 0
        %554 = vmatprep.subr.bf16.mxu0 0
        %555 = vmatpush1.bf16.msra.mxu0 0
        %556 = vmatprep.subr.bf16.mxu0 0
        %557 = vmatpush1.bf16.msra.mxu0 0
        %558 = vmatprep.subr.bf16.mxu0 0
        %559 = vmatpush1.bf16.msra.mxu0 %v542
        %560 = vmatprep.subr.bf16.mxu0 0
        %561 = vmatpush2.bf16.msra.mxu0 0
        %562 = vmatprep.subr.bf16.mxu0 0
        %563 = vmatpush2.bf16.msra.mxu0 0
        %564 = vmatprep.subr.bf16.mxu0 0
        %565 = vmatpush2.bf16.msra.mxu0 0
        %566 = vmatprep.subr.bf16.mxu0 0
        %567 = vmatpush2.bf16.msra.mxu0 0
        %568 = vmatprep.subr.bf16.mxu0 0
        %569 = vmatpush2.bf16.msra.mxu0 0
        %570 = vmatprep.subr.bf16.mxu0 0
        %571 = vmatpush2.bf16.msra.mxu0 0
        %572 = vmatprep.subr.bf16.mxu0 0
        %573 = vmatpush2.bf16.msra.mxu0 0
        %574 = vmatprep.subr.bf16.mxu0 0
        %575 = vmatpush2.bf16.msra.mxu0 0
        %576 = vmatprep.mubr.bf16.mxu0 0
        %577 = vmatmul.mubr.bf16.gmra.mxu0 %v538
        %v578 = vpop.f32.mrf.mxu0
        %v579 = vadd.f32 %v534, %v578
        %v580 = vpop.f32.mrf.mxu0
        %v581 = vpop.f32.mrf.mxu0
        %v582 = vpop.f32.mrf.mxu0
        %583 = vdwg.mxu0
        %s584 = sld [smem:[#allocation2]]
        %v585 = vstv %s584
        %v586 = vmul.f32 %v585, %v579
        %v587 = vld [vmem:[%s439] sm:$0xf]
        %v588 = vpack.c.bf16 %v587, %v587
        %v589 = vld [vmem:[%s6] sm:$0xf]
        %v590 = vld [vmem:[%s6 + $0x4] sm:$0xf]
        %v591 = vld [vmem:[%s6 + $0x8] sm:$0xf]
        %v592 = vld [vmem:[%s6 + $0xc] sm:$0xf]
        %v593 = vld [vmem:[%s6 + $0x10] sm:$0xf]
        %v594 = vld [vmem:[%s6 + $0x14] sm:$0xf]
        %v595 = vld [vmem:[%s6 + $0x18] sm:$0xf]
        %v596 = vld [vmem:[%s6 + $0x1c] sm:$0xf]
        %v597 = vld [vmem:[%s6 + $0x20] sm:$0xf]
        %v598 = vld [vmem:[%s6 + $0x24] sm:$0xf]
        %v599 = vld [vmem:[%s6 + $0x28] sm:$0xf]
        %v600 = vld [vmem:[%s6 + $0x2c] sm:$0xf]
        %v601 = vld [vmem:[%s6 + $0x30] sm:$0xf]
        %v602 = vld [vmem:[%s6 + $0x34] sm:$0xf]
        %v603 = vld [vmem:[%s6 + $0x38] sm:$0xf]
        %v604 = vld [vmem:[%s6 + $0x3c] sm:$0xf]
        %v605 = vld [vmem:[%s7] sm:$0x1]
        %v607 = vlaneseq
        %v608 = vshrl.u32 %v607, 7
        %v609 = vsub.s32 0, %v608
        %v610 = vrot.slane %v605, %v609
        %v628 = vunpack.c.l.b16 %v589
        %v629 = vunpack.c.l.b16 %v590
        %v630 = vunpack.c.l.b16 %v591
        %v631 = vunpack.c.l.b16 %v592
        %v632 = vunpack.c.l.b16 %v593
        %v633 = vunpack.c.l.b16 %v594
        %v634 = vunpack.c.l.b16 %v595
        %v635 = vunpack.c.l.b16 %v596
        %v636 = vunpack.c.l.b16 %v597
        %v637 = vunpack.c.l.b16 %v598
        %v638 = vunpack.c.l.b16 %v599
        %v639 = vunpack.c.l.b16 %v600
        %v640 = vunpack.c.l.b16 %v601
        %v641 = vunpack.c.l.b16 %v602
        %v642 = vunpack.c.l.b16 %v603
        %v643 = vunpack.c.l.b16 %v604
        %v644 = vpack.c.b16 %v629, %v628
        %v645 = vpack.c.b16 %v631, %v630
        %v646 = vpack.c.b16 %v633, %v632
        %v647 = vpack.c.b16 %v635, %v634
        %v648 = vpack.c.b16 %v637, %v636
        %v649 = vpack.c.b16 %v639, %v638
        %v650 = vpack.c.b16 %v641, %v640
        %v651 = vpack.c.b16 %v643, %v642
        %660 = vmatprep.subr.bf16.mxu0 0
        %661 = vmatpush1.bf16.msra.mxu0 %v651
        %662 = vmatprep.subr.bf16.mxu0 0
        %663 = vmatpush1.bf16.msra.mxu0 %v650
        %664 = vmatprep.subr.bf16.mxu0 0
        %665 = vmatpush1.bf16.msra.mxu0 %v649
        %666 = vmatprep.subr.bf16.mxu0 0
        %667 = vmatpush1.bf16.msra.mxu0 %v648
        %668 = vmatprep.subr.bf16.mxu0 0
        %669 = vmatpush1.bf16.msra.mxu0 %v647
        %670 = vmatprep.subr.bf16.mxu0 0
        %671 = vmatpush1.bf16.msra.mxu0 %v646
        %672 = vmatprep.subr.bf16.mxu0 0
        %673 = vmatpush1.bf16.msra.mxu0 %v645
        %674 = vmatprep.subr.bf16.mxu0 0
        %675 = vmatpush1.bf16.msra.mxu0 %v644
        %676 = vmatprep.subr.bf16.mxu0 0
        %677 = vmatpush2.bf16.msra.mxu0 0
        %678 = vmatprep.subr.bf16.mxu0 0
        %679 = vmatpush2.bf16.msra.mxu0 0
        %680 = vmatprep.subr.bf16.mxu0 0
        %681 = vmatpush2.bf16.msra.mxu0 0
        %682 = vmatprep.subr.bf16.mxu0 0
        %683 = vmatpush2.bf16.msra.mxu0 0
        %684 = vmatprep.subr.bf16.mxu0 0
        %685 = vmatpush2.bf16.msra.mxu0 0
        %686 = vmatprep.subr.bf16.mxu0 0
        %687 = vmatpush2.bf16.msra.mxu0 0
        %688 = vmatprep.subr.bf16.mxu0 0
        %689 = vmatpush2.bf16.msra.mxu0 0
        %690 = vmatprep.subr.bf16.mxu0 0
        %691 = vmatpush2.bf16.msra.mxu0 0
        %692 = vmatprep.mubr.bf16.mxu0 0
        %693 = vmatmul.mubr.bf16.gmra.mxu0 %v588
        %v694 = vpop.f32.mrf.mxu0
        %v695 = vadd.f32 %v610, %v694
        %v696 = vpop.f32.mrf.mxu0
        %v697 = vpop.f32.mrf.mxu0
        %v698 = vpop.f32.mrf.mxu0
        %699 = vdwg.mxu0
        %s700 = sld [smem:[#allocation2 + $0x1]]
        %v701 = vstv %s700
        %v702 = vmul.f32 %v701, %v695
        %v703 = vadd.f32 %v586, %v702
        %v704 = vxor.u32 %v703, 2147483648
        %v705 = vmul.f32 %v704, 1.442695
        %v706 = vpow.pop %v705
        %v707 = vadd.f32 %v706, 1.0
        %v708 = vrcp.pop %v707
        %v709 = vmul.f32 1.0, %v708
        %v710 = vmul.f32 %v703, %v709
        %v711 = vpack.c.bf16 %v710, %v710
        %v712 = vld [vmem:[%s10] sm:$0xf]
        %v713 = vld [vmem:[%s10 + $0x4] sm:$0xf]
        %v714 = vld [vmem:[%s10 + $0x8] sm:$0xf]
        %v715 = vld [vmem:[%s10 + $0xc] sm:$0xf]
        %v716 = vld [vmem:[%s10 + $0x10] sm:$0xf]
        %v717 = vld [vmem:[%s10 + $0x14] sm:$0xf]
        %v718 = vld [vmem:[%s10 + $0x18] sm:$0xf]
        %v719 = vld [vmem:[%s10 + $0x1c] sm:$0xf]
        %v720 = vld [vmem:[%s11] sm:$0x1]
        %v721 = vld [vmem:[%s9] sm:$0xf]
        %v722 = vld [vmem:[%s9 + $0x4] sm:$0xf]
        %v723 = vld [vmem:[%s9 + $0x8] sm:$0xf]
        %v724 = vld [vmem:[%s9 + $0xc] sm:$0xf]
        %v725 = vld [vmem:[%s9 + $0x10] sm:$0xf]
        %v726 = vld [vmem:[%s9 + $0x14] sm:$0xf]
        %v727 = vld [vmem:[%s9 + $0x18] sm:$0xf]
        %v728 = vld [vmem:[%s9 + $0x1c] sm:$0xf]
        %v737 = vunpack.c.l.b16 %v721
        %v738 = vunpack.c.l.b16 %v722
        %v739 = vunpack.c.l.b16 %v723
        %v740 = vunpack.c.l.b16 %v724
        %v741 = vunpack.c.l.b16 %v725
        %v742 = vunpack.c.l.b16 %v726
        %v743 = vunpack.c.l.b16 %v727
        %v744 = vunpack.c.l.b16 %v728
        %v745 = vpack.c.b16 %v738, %v737
        %v746 = vpack.c.b16 %v740, %v739
        %v747 = vpack.c.b16 %v742, %v741
        %v748 = vpack.c.b16 %v744, %v743
        %vm753 = vcmask 523264
        %v755 = vsel %vm753, %v711, 0
        %757 = vmatprep.subr.bf16.mxu0 0
        %758 = vmatpush1.bf16.msra.mxu0 0
        %759 = vmatprep.subr.bf16.mxu0 0
        %760 = vmatpush1.bf16.msra.mxu0 0
        %761 = vmatprep.subr.bf16.mxu0 0
        %762 = vmatpush1.bf16.msra.mxu0 0
        %763 = vmatprep.subr.bf16.mxu0 0
        %764 = vmatpush1.bf16.msra.mxu0 0
        %765 = vmatprep.subr.bf16.mxu0 0
        %766 = vmatpush1.bf16.msra.mxu0 %v748
        %767 = vmatprep.subr.bf16.mxu0 0
        %768 = vmatpush1.bf16.msra.mxu0 %v747
        %769 = vmatprep.subr.bf16.mxu0 0
        %770 = vmatpush1.bf16.msra.mxu0 %v746
        %771 = vmatprep.subr.bf16.mxu0 0
        %772 = vmatpush1.bf16.msra.mxu0 %v745
        %773 = vmatprep.subr.bf16.mxu0 0
        %774 = vmatpush2.bf16.msra.mxu0 0
        %775 = vmatprep.subr.bf16.mxu0 0
        %776 = vmatpush2.bf16.msra.mxu0 0
        %777 = vmatprep.subr.bf16.mxu0 0
        %778 = vmatpush2.bf16.msra.mxu0 0
        %779 = vmatprep.subr.bf16.mxu0 0
        %780 = vmatpush2.bf16.msra.mxu0 0
        %781 = vmatprep.subr.bf16.mxu0 0
        %782 = vmatpush2.bf16.msra.mxu0 0
        %783 = vmatprep.subr.bf16.mxu0 0
        %784 = vmatpush2.bf16.msra.mxu0 0
        %785 = vmatprep.subr.bf16.mxu0 0
        %786 = vmatpush2.bf16.msra.mxu0 0
        %787 = vmatprep.subr.bf16.mxu0 0
        %788 = vmatpush2.bf16.msra.mxu0 0
        %789 = vmatprep.mubr.bf16.mxu0 0
        %790 = vmatmul.mubr.bf16.gmra.mxu0 %v755
        %v791 = vpop.f32.mrf.mxu0
        %v792 = vadd.f32 0.0, %v791
        %v793 = vpop.f32.mrf.mxu0
        %v794 = vpop.f32.mrf.mxu0
        %v795 = vpop.f32.mrf.mxu0
        %796 = vdwg.mxu0
        %v797 = vld [vmem:[%s8] sm:$0x3]
        %v798 = vpack.c.bf16 %v792, %v792
        %s799 = scalar_lea.vmem %s9, 32
        %v800 = vld [vmem:[%s799] sm:$0xf]
        %v801 = vld [vmem:[%s799 + $0x4] sm:$0xf]
        %v802 = vld [vmem:[%s799 + $0x8] sm:$0xf]
        %v803 = vld [vmem:[%s799 + $0xc] sm:$0xf]
        %v804 = vld [vmem:[%s799 + $0x10] sm:$0xf]
        %v805 = vld [vmem:[%s799 + $0x14] sm:$0xf]
        %v806 = vld [vmem:[%s799 + $0x18] sm:$0xf]
        %v807 = vld [vmem:[%s799 + $0x1c] sm:$0xf]
        %v816 = vunpack.c.l.b16 %v800
        %v817 = vunpack.c.l.b16 %v801
        %v818 = vunpack.c.l.b16 %v802
        %v819 = vunpack.c.l.b16 %v803
        %v820 = vunpack.c.l.b16 %v804
        %v821 = vunpack.c.l.b16 %v805
        %v822 = vunpack.c.l.b16 %v806
        %v823 = vunpack.c.l.b16 %v807
        %v824 = vpack.c.b16 %v817, %v816
        %v825 = vpack.c.b16 %v819, %v818
        %v826 = vpack.c.b16 %v821, %v820
        %v827 = vpack.c.b16 %v823, %v822
        %832 = vmatprep.subr.bf16.mxu0 0
        %833 = vmatpush1.bf16.msra.mxu0 0
        %834 = vmatprep.subr.bf16.mxu0 0
        %835 = vmatpush1.bf16.msra.mxu0 0
        %836 = vmatprep.subr.bf16.mxu0 0
        %837 = vmatpush1.bf16.msra.mxu0 0
        %838 = vmatprep.subr.bf16.mxu0 0
        %839 = vmatpush1.bf16.msra.mxu0 0
        %840 = vmatprep.subr.bf16.mxu0 0
        %841 = vmatpush1.bf16.msra.mxu0 %v827
        %842 = vmatprep.subr.bf16.mxu0 0
        %843 = vmatpush1.bf16.msra.mxu0 %v826
        %844 = vmatprep.subr.bf16.mxu0 0
        %845 = vmatpush1.bf16.msra.mxu0 %v825
        %846 = vmatprep.subr.bf16.mxu0 0
        %847 = vmatpush1.bf16.msra.mxu0 %v824
        %848 = vmatprep.subr.bf16.mxu0 0
        %849 = vmatpush2.bf16.msra.mxu0 0
        %850 = vmatprep.subr.bf16.mxu0 0
        %851 = vmatpush2.bf16.msra.mxu0 0
        %852 = vmatprep.subr.bf16.mxu0 0
        %853 = vmatpush2.bf16.msra.mxu0 0
        %854 = vmatprep.subr.bf16.mxu0 0
        %855 = vmatpush2.bf16.msra.mxu0 0
        %856 = vmatprep.subr.bf16.mxu0 0
        %857 = vmatpush2.bf16.msra.mxu0 0
        %858 = vmatprep.subr.bf16.mxu0 0
        %859 = vmatpush2.bf16.msra.mxu0 0
        %860 = vmatprep.subr.bf16.mxu0 0
        %861 = vmatpush2.bf16.msra.mxu0 0
        %862 = vmatprep.subr.bf16.mxu0 0
        %863 = vmatpush2.bf16.msra.mxu0 0
        %864 = vmatprep.mubr.bf16.mxu0 0
        %865 = vmatmul.mubr.bf16.gmra.mxu0 %v755
        %v866 = vpop.f32.mrf.mxu0
        %v867 = vadd.f32 0.0, %v866
        %v868 = vpop.f32.mrf.mxu0
        %v869 = vpop.f32.mrf.mxu0
        %v870 = vpop.f32.mrf.mxu0
        %871 = vdwg.mxu0
        %s872 = scalar_lea.vmem %s8, 2
        %v873 = vld [vmem:[%s872] sm:$0x3]
        %v874 = vpack.c.bf16 %v867, %v867
        %vm875 = vcmask 31744
        %v877 = vsel %vm875, %v873, 0
        %vm879 = vcmask 1041408
        %v881 = vsel %vm879, %v874, 0
        %883 = vmatprep.subr.bf16.mxu0 0
        %884 = vmatpush1.bf16.msra.mxu0 0
        %885 = vmatprep.subr.bf16.mxu0 0
        %886 = vmatpush1.bf16.msra.mxu0 0
        %887 = vmatprep.subr.bf16.mxu0 0
        %888 = vmatpush1.bf16.msra.mxu0 0
        %889 = vmatprep.subr.bf16.mxu0 0
        %890 = vmatpush1.bf16.msra.mxu0 0
        %891 = vmatprep.subr.bf16.mxu0 0
        %892 = vmatpush1.bf16.msra.mxu0 0
        %893 = vmatprep.subr.bf16.mxu0 0
        %894 = vmatpush1.bf16.msra.mxu0 0
        %895 = vmatprep.subr.bf16.mxu0 0
        %896 = vmatpush1.bf16.msra.mxu0 0
        %897 = vmatprep.subr.bf16.mxu0 0
        %898 = vmatpush1.bf16.msra.mxu0 %v881
        %899 = vmatprep.subr.bf16.mxu0 0
        %900 = vmatpush2.bf16.msra.mxu0 0
        %901 = vmatprep.subr.bf16.mxu0 0
        %902 = vmatpush2.bf16.msra.mxu0 0
        %903 = vmatprep.subr.bf16.mxu0 0
        %904 = vmatpush2.bf16.msra.mxu0 0
        %905 = vmatprep.subr.bf16.mxu0 0
        %906 = vmatpush2.bf16.msra.mxu0 0
        %907 = vmatprep.subr.bf16.mxu0 0
        %908 = vmatpush2.bf16.msra.mxu0 0
        %909 = vmatprep.subr.bf16.mxu0 0
        %910 = vmatpush2.bf16.msra.mxu0 0
        %911 = vmatprep.subr.bf16.mxu0 0
        %912 = vmatpush2.bf16.msra.mxu0 0
        %913 = vmatprep.subr.bf16.mxu0 0
        %914 = vmatpush2.bf16.msra.mxu0 0
        %915 = vmatprep.mubr.bf16.mxu0 0
        %916 = vmatmul.mubr.bf16.gmra.mxu0 %v877
        %v917 = vpop.f32.mrf.mxu0
        %v918 = vadd.f32 0.0, %v917
        %v919 = vpop.f32.mrf.mxu0
        %v920 = vpop.f32.mrf.mxu0
        %v921 = vpop.f32.mrf.mxu0
        %922 = vdwg.mxu0
        %v924 = vsel %vm875, %v797, 0
        %v927 = vsel %vm879, %v798, 0
        %929 = vmatprep.subr.bf16.mxu0 0
        %930 = vmatpush1.bf16.msra.mxu0 0
        %931 = vmatprep.subr.bf16.mxu0 0
        %932 = vmatpush1.bf16.msra.mxu0 0
        %933 = vmatprep.subr.bf16.mxu0 0
        %934 = vmatpush1.bf16.msra.mxu0 0
        %935 = vmatprep.subr.bf16.mxu0 0
        %936 = vmatpush1.bf16.msra.mxu0 0
        %937 = vmatprep.subr.bf16.mxu0 0
        %938 = vmatpush1.bf16.msra.mxu0 0
        %939 = vmatprep.subr.bf16.mxu0 0
        %940 = vmatpush1.bf16.msra.mxu0 0
        %941 = vmatprep.subr.bf16.mxu0 0
        %942 = vmatpush1.bf16.msra.mxu0 0
        %943 = vmatprep.subr.bf16.mxu0 0
        %944 = vmatpush1.bf16.msra.mxu0 %v927
        %945 = vmatprep.subr.bf16.mxu0 0
        %946 = vmatpush2.bf16.msra.mxu0 0
        %947 = vmatprep.subr.bf16.mxu0 0
        %948 = vmatpush2.bf16.msra.mxu0 0
        %949 = vmatprep.subr.bf16.mxu0 0
        %950 = vmatpush2.bf16.msra.mxu0 0
        %951 = vmatprep.subr.bf16.mxu0 0
        %952 = vmatpush2.bf16.msra.mxu0 0
        %953 = vmatprep.subr.bf16.mxu0 0
        %954 = vmatpush2.bf16.msra.mxu0 0
        %955 = vmatprep.subr.bf16.mxu0 0
        %956 = vmatpush2.bf16.msra.mxu0 0
        %957 = vmatprep.subr.bf16.mxu0 0
        %958 = vmatpush2.bf16.msra.mxu0 0
        %959 = vmatprep.subr.bf16.mxu0 0
        %960 = vmatpush2.bf16.msra.mxu0 0
        %961 = vmatprep.mubr.bf16.mxu0 0
        %962 = vmatmul.mubr.bf16.gmra.mxu0 %v924
        %v963 = vpop.f32.mrf.mxu0
        %v964 = vadd.f32 %v918, %v963
        %v965 = vpop.f32.mrf.mxu0
        %v966 = vpop.f32.mrf.mxu0
        %v967 = vpop.f32.mrf.mxu0
        %968 = vdwg.mxu0
        %s969 = scalar_lea.vmem %s9, 64
        %v970 = vld [vmem:[%s969] sm:$0xf]
        %v971 = vld [vmem:[%s969 + $0x4] sm:$0xf]
        %v972 = vld [vmem:[%s969 + $0x8] sm:$0xf]
        %v973 = vld [vmem:[%s969 + $0xc] sm:$0xf]
        %v974 = vld [vmem:[%s969 + $0x10] sm:$0xf]
        %v975 = vld [vmem:[%s969 + $0x14] sm:$0xf]
        %v976 = vld [vmem:[%s969 + $0x18] sm:$0xf]
        %v977 = vld [vmem:[%s969 + $0x1c] sm:$0xf]
        %v986 = vunpack.c.l.b16 %v970
        %v987 = vunpack.c.l.b16 %v971
        %v988 = vunpack.c.l.b16 %v972
        %v989 = vunpack.c.l.b16 %v973
        %v990 = vunpack.c.l.b16 %v974
        %v991 = vunpack.c.l.b16 %v975
        %v992 = vunpack.c.l.b16 %v976
        %v993 = vunpack.c.l.b16 %v977
        %v994 = vpack.c.b16 %v987, %v986
        %v995 = vpack.c.b16 %v989, %v988
        %v996 = vpack.c.b16 %v991, %v990
        %v997 = vpack.c.b16 %v993, %v992
        %1002 = vmatprep.subr.bf16.mxu0 0
        %1003 = vmatpush1.bf16.msra.mxu0 0
        %1004 = vmatprep.subr.bf16.mxu0 0
        %1005 = vmatpush1.bf16.msra.mxu0 0
        %1006 = vmatprep.subr.bf16.mxu0 0
        %1007 = vmatpush1.bf16.msra.mxu0 0
        %1008 = vmatprep.subr.bf16.mxu0 0
        %1009 = vmatpush1.bf16.msra.mxu0 0
        %1010 = vmatprep.subr.bf16.mxu0 0
        %1011 = vmatpush1.bf16.msra.mxu0 %v997
        %1012 = vmatprep.subr.bf16.mxu0 0
        %1013 = vmatpush1.bf16.msra.mxu0 %v996
        %1014 = vmatprep.subr.bf16.mxu0 0
        %1015 = vmatpush1.bf16.msra.mxu0 %v995
        %1016 = vmatprep.subr.bf16.mxu0 0
        %1017 = vmatpush1.bf16.msra.mxu0 %v994
        %1018 = vmatprep.subr.bf16.mxu0 0
        %1019 = vmatpush2.bf16.msra.mxu0 0
        %1020 = vmatprep.subr.bf16.mxu0 0
        %1021 = vmatpush2.bf16.msra.mxu0 0
        %1022 = vmatprep.subr.bf16.mxu0 0
        %1023 = vmatpush2.bf16.msra.mxu0 0
        %1024 = vmatprep.subr.bf16.mxu0 0
        %1025 = vmatpush2.bf16.msra.mxu0 0
        %1026 = vmatprep.subr.bf16.mxu0 0
        %1027 = vmatpush2.bf16.msra.mxu0 0
        %1028 = vmatprep.subr.bf16.mxu0 0
        %1029 = vmatpush2.bf16.msra.mxu0 0
        %1030 = vmatprep.subr.bf16.mxu0 0
        %1031 = vmatpush2.bf16.msra.mxu0 0
        %1032 = vmatprep.subr.bf16.mxu0 0
        %1033 = vmatpush2.bf16.msra.mxu0 0
        %1034 = vmatprep.mubr.bf16.mxu0 0
        %1035 = vmatmul.mubr.bf16.gmra.mxu0 %v755
        %v1036 = vpop.f32.mrf.mxu0
        %v1037 = vadd.f32 0.0, %v1036
        %v1038 = vpop.f32.mrf.mxu0
        %v1039 = vpop.f32.mrf.mxu0
        %v1040 = vpop.f32.mrf.mxu0
        %1041 = vdwg.mxu0
        %s1042 = scalar_lea.vmem %s8, 4
        %v1043 = vld [vmem:[%s1042] sm:$0x3]
        %v1044 = vpack.c.bf16 %v1037, %v1037
        %v1046 = vsel %vm875, %v1043, 0
        %v1049 = vsel %vm879, %v1044, 0
        %1051 = vmatprep.subr.bf16.mxu0 0
        %1052 = vmatpush1.bf16.msra.mxu0 0
        %1053 = vmatprep.subr.bf16.mxu0 0
        %1054 = vmatpush1.bf16.msra.mxu0 0
        %1055 = vmatprep.subr.bf16.mxu0 0
        %1056 = vmatpush1.bf16.msra.mxu0 0
        %1057 = vmatprep.subr.bf16.mxu0 0
        %1058 = vmatpush1.bf16.msra.mxu0 0
        %1059 = vmatprep.subr.bf16.mxu0 0
        %1060 = vmatpush1.bf16.msra.mxu0 0
        %1061 = vmatprep.subr.bf16.mxu0 0
        %1062 = vmatpush1.bf16.msra.mxu0 0
        %1063 = vmatprep.subr.bf16.mxu0 0
        %1064 = vmatpush1.bf16.msra.mxu0 0
        %1065 = vmatprep.subr.bf16.mxu0 0
        %1066 = vmatpush1.bf16.msra.mxu0 %v1049
        %1067 = vmatprep.subr.bf16.mxu0 0
        %1068 = vmatpush2.bf16.msra.mxu0 0
        %1069 = vmatprep.subr.bf16.mxu0 0
        %1070 = vmatpush2.bf16.msra.mxu0 0
        %1071 = vmatprep.subr.bf16.mxu0 0
        %1072 = vmatpush2.bf16.msra.mxu0 0
        %1073 = vmatprep.subr.bf16.mxu0 0
        %1074 = vmatpush2.bf16.msra.mxu0 0
        %1075 = vmatprep.subr.bf16.mxu0 0
        %1076 = vmatpush2.bf16.msra.mxu0 0
        %1077 = vmatprep.subr.bf16.mxu0 0
        %1078 = vmatpush2.bf16.msra.mxu0 0
        %1079 = vmatprep.subr.bf16.mxu0 0
        %1080 = vmatpush2.bf16.msra.mxu0 0
        %1081 = vmatprep.subr.bf16.mxu0 0
        %1082 = vmatpush2.bf16.msra.mxu0 0
        %1083 = vmatprep.mubr.bf16.mxu0 0
        %1084 = vmatmul.mubr.bf16.gmra.mxu0 %v1046
        %v1085 = vpop.f32.mrf.mxu0
        %v1086 = vadd.f32 0.0, %v1085
        %v1087 = vpop.f32.mrf.mxu0
        %v1088 = vpop.f32.mrf.mxu0
        %v1089 = vpop.f32.mrf.mxu0
        %1090 = vdwg.mxu0
        %v1091 = vadd.f32 %v964, %v1086
        %v1092 = vpack.c.bf16 %v1091, %v1091
        %v1094 = vlaneseq
        %v1095 = vshrl.u32 %v1094, 7
        %v1096 = vsub.s32 0, %v1095
        %v1097 = vrot.slane %v720, %v1096
        %v1107 = vunpack.c.l.b16 %v712
        %v1108 = vunpack.c.l.b16 %v713
        %v1109 = vunpack.c.l.b16 %v714
        %v1110 = vunpack.c.l.b16 %v715
        %v1111 = vunpack.c.l.b16 %v716
        %v1112 = vunpack.c.l.b16 %v717
        %v1113 = vunpack.c.l.b16 %v718
        %v1114 = vunpack.c.l.b16 %v719
        %v1115 = vpack.c.b16 %v1108, %v1107
        %v1116 = vpack.c.b16 %v1110, %v1109
        %v1117 = vpack.c.b16 %v1112, %v1111
        %v1118 = vpack.c.b16 %v1114, %v1113
        %v1124 = vsel %vm753, %v1092, 0
        %1126 = vmatprep.subr.bf16.mxu0 0
        %1127 = vmatpush1.bf16.msra.mxu0 0
        %1128 = vmatprep.subr.bf16.mxu0 0
        %1129 = vmatpush1.bf16.msra.mxu0 0
        %1130 = vmatprep.subr.bf16.mxu0 0
        %1131 = vmatpush1.bf16.msra.mxu0 0
        %1132 = vmatprep.subr.bf16.mxu0 0
        %1133 = vmatpush1.bf16.msra.mxu0 0
        %1134 = vmatprep.subr.bf16.mxu0 0
        %1135 = vmatpush1.bf16.msra.mxu0 %v1118
        %1136 = vmatprep.subr.bf16.mxu0 0
        %1137 = vmatpush1.bf16.msra.mxu0 %v1117
        %1138 = vmatprep.subr.bf16.mxu0 0
        %1139 = vmatpush1.bf16.msra.mxu0 %v1116
        %1140 = vmatprep.subr.bf16.mxu0 0
        %1141 = vmatpush1.bf16.msra.mxu0 %v1115
        %1142 = vmatprep.subr.bf16.mxu0 0
        %1143 = vmatpush2.bf16.msra.mxu0 0
        %1144 = vmatprep.subr.bf16.mxu0 0
        %1145 = vmatpush2.bf16.msra.mxu0 0
        %1146 = vmatprep.subr.bf16.mxu0 0
        %1147 = vmatpush2.bf16.msra.mxu0 0
        %1148 = vmatprep.subr.bf16.mxu0 0
        %1149 = vmatpush2.bf16.msra.mxu0 0
        %1150 = vmatprep.subr.bf16.mxu0 0
        %1151 = vmatpush2.bf16.msra.mxu0 0
        %1152 = vmatprep.subr.bf16.mxu0 0
        %1153 = vmatpush2.bf16.msra.mxu0 0
        %1154 = vmatprep.subr.bf16.mxu0 0
        %1155 = vmatpush2.bf16.msra.mxu0 0
        %1156 = vmatprep.subr.bf16.mxu0 0
        %1157 = vmatpush2.bf16.msra.mxu0 0
        %1158 = vmatprep.mubr.bf16.mxu0 0
        %1159 = vmatmul.mubr.bf16.gmra.mxu0 %v1124
        %v1160 = vpop.f32.mrf.mxu0
        %v1161 = vadd.f32 %v1097, %v1160
        %v1162 = vpop.f32.mrf.mxu0
        %v1163 = vpop.f32.mrf.mxu0
        %v1164 = vpop.f32.mrf.mxu0
        %1165 = vdwg.mxu0
        %vm1166 = vcmask 519168
        %1167 = vst.msk [vmem:[%s431] sm:$0xf] %vm1166, %v1161
        %s1168 = sand.u32 %s297, 1
        %s1169 = scalar_lea.sflag [#allocation3], %s1168
        %s1170 = sand.u32 %s297, 1
        %s1171 = smul.addr %s1170, 4
        %s1172 = scalar_lea.vmem [#allocation5], %s1171
        // Predicated region
        $region73: #{tpu_custom_call.1} parent=67 // pred_check
          %p1173 = pneg %p307
        $region74: #{tpu_custom_call.1} parent=67 // pred_check_branch
          %1175 = sbr.rel (%p1173) target = $region76
        $region75: #{tpu_custom_call.1} parent=67 // pred_region
          %s1177 = ssub.s32 64, 64
          %1178 = vsyncadd %s1169, %s1177
          %s1179 = smul.addr %s27, 64
          %s1180 = scalar_lea.hbm %s12, %s1179
          %s1182 = sshll.u32 %s1172, 4
          %s1183 = int_to_ptr.vmem [resolvable:$true] %s1182
          %1185 = dma.vmem_to_hbm [thread:$0]  %s1183, 64, %s1180, %s1169
        $region76: #{tpu_custom_call.1} parent=67 // pred_fallthru
          _
      $region68: #{tpu_custom_call.1} parent=5 // pred_fallthru
        _
      %p1186 = scmp.le.s32.totalorder 2, %s22
      // Predicated region
      $region77: #{tpu_custom_call.1} parent=5 // pred_check
        %p1187 = pneg %p1186
      $region78: #{tpu_custom_call.1} parent=5 // pred_check_branch
        %1189 = sbr.rel (%p1187) target = $region80
      $region79: #{tpu_custom_call.1} parent=5 // pred_region
        %s1190 = ssub.s32 %s22, 2
        // Predicated region
        $region81: #{tpu_custom_call.1} parent=79 // pred_check
          %p1191 = pneg %p313
        $region82: #{tpu_custom_call.1} parent=79 // pred_check_branch
          %1193 = sbr.rel (%p1191) target = $region84
        $region83: #{tpu_custom_call.1} parent=79 // pred_region
          %s1194 = sand.u32 %s298, 1
          %s1195 = scalar_lea.sflag [#allocation3], %s1194
          %s1196 = sand.u32 %s298, 1
          %s1197 = smul.addr %s1196, 4
          %s1198 = scalar_lea.vmem [#allocation5], %s1197
          %1199 = dma.done %s1195, 64
        $region84: #{tpu_custom_call.1} parent=79 // pred_fallthru
          _
      $region80: #{tpu_custom_call.1} parent=5 // pred_fallthru
        _
    $region6: #{tpu_custom_call.1} parent=1 // loop_footer
      %s26 = sadd.s32 1, %s22
    $region7: #{tpu_custom_call.1} parent=1 // loop_footer_branch
      %21 = sbr.rel target = $region3
    $region8: #{tpu_custom_call.1} parent=1 // loop_exit
      _
    %1200 = vsyncpa [#allocation3], 1
    %s1201 = scalar_lea.sflag [#allocation3], 1
    %1202 = vsyncpa %s1201, 1
    %1203 = vsyncpa [#allocation4], 1
    %s1204 = scalar_lea.sflag [#allocation4], 1
    %1205 = vsyncpa %s1204, 1

</llo_original>
